<compile_context>
chip_gen: v5e
topology: v5e:2x2
jax: 0.10.0
libtpu: 0.0.40
codegen_flags: <defaults>
</compile_context>

<pallas_src>
from functools import partial

import jax
import jax.numpy as jnp
from jax.experimental import pallas as pl
from jax.experimental.pallas import tpu as pltpu

_INV_SQRT2 = 0.7071067811865476  # 1/sqrt(2) for exact (erf) GELU, PyTorch default


# ----------------------------- fused kernel ---------------------------------


def _mixffn_kernel(xc_ref, xt_ref, xb_ref, w1_ref, b1_ref, kdw_ref, bdw_ref,
                   w2_ref, b2_ref, o_ref, mid_ref, *, TH, W):
    # xc_ref: (1, TH*W, Cin) tokens of this row block
    # xt_ref / xb_ref: (1, W, Cin) the image rows just above / below the block
    # w1_ref: (Cin, Cmid)  b1_ref: (1, Cmid)
    # kdw_ref: (9, Cmid)   bdw_ref: (1, Cmid)
    # w2_ref: (Cmid, Cin)  b2_ref: (1, Cin)
    # o_ref: (1, TH*W, Cin)
    # mid_ref: VMEM scratch ((TH+2)*W, Cmid) f32 -- fc1 output incl. halo rows
    r = pl.program_id(1)
    nr = pl.num_programs(1)
    NT = TH * W
    NTF = (TH + 2) * W
    Cmid = w1_ref.shape[1]

    # ----------------- fc1 on the row block + its two halo rows -------------
    w1 = w1_ref[...]                               # native dtype -> MXU
    b1 = b1_ref[0].astype(jnp.float32)[None, :]

    mid_ref[pl.ds(W, NT), :] = (
        jnp.dot(xc_ref[0], w1, preferred_element_type=jnp.float32) + b1)
    mid_ref[pl.ds(0, W), :] = (
        jnp.dot(xt_ref[0], w1, preferred_element_type=jnp.float32) + b1)
    mid_ref[pl.ds((TH + 1) * W, W), :] = (
        jnp.dot(xb_ref[0], w1, preferred_element_type=jnp.float32) + b1)

    # Halo rows that fall outside the image are the conv's zero padding.
    @pl.when(r == 0)
    def _():
        mid_ref[pl.ds(0, W), :] = jnp.zeros((W, Cmid), jnp.float32)

    @pl.when(r == nr - 1)
    def _():
        mid_ref[pl.ds((TH + 1) * W, W), :] = jnp.zeros((W, Cmid), jnp.float32)

    # ----------------- depthwise 3x3 conv, padding = 1 ----------------------
    # Column-neighbour values via two XLU rolls of the WHOLE halo'd buffer.
    # The boundary masks come from rolling the column-index vector with the
    # same calls, so they are direction- and wrap-agnostic and also kill any
    # cross-row leakage of the flattened layout.
    colF = jax.lax.broadcasted_iota(jnp.int32, (NTF, 1), 0) % W
    col_p = pltpu.roll(colF, shift=1, axis=0)
    col_m = pltpu.roll(colF, shift=NTF - 1, axis=0)
    lpf = (col_p == colF - 1).astype(jnp.float32)
    lmf = (col_m == colF - 1).astype(jnp.float32)
    rpf = (col_p == colF + 1).astype(jnp.float32)
    rmf = (col_m == colF + 1).astype(jnp.float32)

    mid = mid_ref[...]                              # (NTF, Cmid) f32
    sp = pltpu.roll(mid, shift=1, axis=0)
    sm = pltpu.roll(mid, shift=NTF - 1, axis=0)
    left = sp * lpf + sm * lmf                      # col-1 value, 0 at col 0
    right = sp * rpf + sm * rmf                     # col+1 value, 0 at col W-1

    kdw = kdw_ref[...].astype(jnp.float32)          # (9, Cmid)
    bdw = bdw_ref[0].astype(jnp.float32)

    acc = jnp.zeros((NT, Cmid), jnp.float32)
    for di in range(3):
        b0 = di * W                                 # static, W % 8 == 0 -> aligned
        acc = acc + left[b0:b0 + NT, :] * kdw[3 * di + 0][None, :]
        acc = acc + mid[b0:b0 + NT, :] * kdw[3 * di + 1][None, :]
        acc = acc + right[b0:b0 + NT, :] * kdw[3 * di + 2][None, :]
    acc = acc + bdw[None, :]

    # ----------------- GELU (exact, erf) + fc2 ------------------------------
    g = 0.5 * acc * (1.0 + jax.lax.erf(acc * _INV_SQRT2))
    out = jnp.dot(g.astype(w2_ref.dtype), w2_ref[...],
                  preferred_element_type=jnp.float32)
    out = out + b2_ref[0].astype(jnp.float32)[None, :]
    o_ref[0] = out.astype(o_ref.dtype)


# ------------------------------- wrapper -------------------------------------


def _round_up(v, m):
    return -(-v // m) * m


def _pick_row_block(h, w, target_tokens=1024):
    best = 1
    for th in range(1, h + 1):
        if h % th == 0 and th * w <= max(target_tokens, w):
            best = th
    return best


def mixffn_forward(x, h, w, params, *, row_block=None):
    """x: (B, N, in_dim) with N == h*w. Returns (B, N, in_dim)."""
    B, N, Cin = x.shape
    if N != h * w:
        raise ValueError("N must equal h*w")
    if w % 8 != 0:
        # TODO(synk): widths that are not multiples of 8 would need sublane
        # padding of the row blocks; SegFormer feature maps are powers of two.
        raise ValueError("image width must be a multiple of 8")

    if row_block is None:
        row_block = _pick_row_block(h, w)
    if h % row_block != 0:
        row_block = _pick_row_block(h, w, target_tokens=row_block * w)
    TH = row_block
    R = h // TH
    NT = TH * w

    # Pad the intermediate channel dim to a multiple of 128 (lane dense VMEM
    # intermediate).  Only small weight tensors are padded; activations are
    # untouched, and the zero pad is mathematically inert end-to-end.
    Cmid = params["fc1_w"].shape[1]
    Cmid_p = _round_up(Cmid, 128)
    pad = Cmid_p - Cmid
    w1 = params["fc1_w"]
    b1 = params["fc1_b"]
    kdw = params["dw_w"].reshape(9, Cmid)
    bdw = params["dw_b"]
    w2 = params["fc2_w"]
    b2 = params["fc2_b"]
    if pad:
        w1 = jnp.pad(w1, ((0, 0), (0, pad)))
        b1 = jnp.pad(b1, ((0, 0), (0, pad)))
        kdw = jnp.pad(kdw, ((0, 0), (0, pad)))
        bdw = jnp.pad(bdw, ((0, 0), (0, pad)))
        w2 = jnp.pad(w2, ((0, pad), (0, 0)))

    kern = partial(_mixffn_kernel, TH=TH, W=w)

    grid_spec = pltpu.PrefetchScalarGridSpec(
        num_scalar_prefetch=0,
        grid=(B, R),
        in_specs=[
            # tokens of this row block
            pl.BlockSpec((1, NT, Cin), lambda b, r: (b, r, 0)),
            # one image row above / below (clamped at the image boundary; the
            # kernel zeroes the corresponding halo row there)
            pl.BlockSpec((1, w, Cin),
                         lambda b, r: (b, jnp.maximum(r * TH - 1, 0), 0)),
            pl.BlockSpec((1, w, Cin),
                         lambda b, r: (b, jnp.minimum((r + 1) * TH, h - 1), 0)),
            # weights: constant block index -> fetched once, reused every step
            pl.BlockSpec((Cin, Cmid_p), lambda b, r: (0, 0)),
            pl.BlockSpec((1, Cmid_p), lambda b, r: (0, 0)),
            pl.BlockSpec((9, Cmid_p), lambda b, r: (0, 0)),
            pl.BlockSpec((1, Cmid_p), lambda b, r: (0, 0)),
            pl.BlockSpec((Cmid_p, Cin), lambda b, r: (0, 0)),
            pl.BlockSpec((1, Cin), lambda b, r: (0, 0)),
        ],
        out_specs=pl.BlockSpec((1, NT, Cin), lambda b, r: (b, r, 0)),
        scratch_shapes=[pltpu.VMEM(((TH + 2) * w, Cmid_p), jnp.float32)],
    )

    return pl.pallas_call(
        kern,
        out_shape=jax.ShapeDtypeStruct((B, N, Cin), x.dtype),
        grid_spec=grid_spec,
        compiler_params=pltpu.CompilerParams(
            dimension_semantics=("parallel", "parallel"),
            vmem_limit_bytes=48 * 1024 * 1024,
        ),
    )(x, x, x, w1, b1, kdw, bdw, w2, b2)


# ------------------------- pure-JAX reference --------------------------------


def mixffn_reference(x, h, w, params):
    y = x @ params["fc1_w"] + params["fc1_b"][0]
    B, N, C = y.shape
    y = y.reshape(B, h, w, C)
    yp = jnp.pad(y, ((0, 0), (1, 1), (1, 1), (0, 0)))
    out = jnp.zeros_like(y)
    for di in range(3):
        for dj in range(3):
            out = out + yp[:, di:di + h, dj:dj + w, :] * params["dw_w"][di, dj]
    out = out + params["dw_b"][0]
    y = out.reshape(B, N, C)
    g = 0.5 * y * (1.0 + jax.lax.erf(y * _INV_SQRT2))
    return g @ params["fc2_w"] + params["fc2_b"][0]


# --------------------------------- main ---------------------------------------


if __name__ == "__main__":
    B, in_dim, inter_dim, H, W = 2, 32, 64, 16, 16
    N = H * W

    key = jax.random.PRNGKey(0)
    k_x, k1, k2, k3, k4, k5, k6 = jax.random.split(key, 7)

    # JAX-layout synthetic params (linear weights are (Din, Dout), depthwise
    # weights are (3, 3, C) == PyTorch shapes transposed).
    params = {
        "fc1_w": jax.random.normal(k1, (in_dim, inter_dim), jnp.float32) * 0.1,
        "fc1_b": jax.random.normal(k2, (1, inter_dim), jnp.float32) * 0.1,
        "dw_w": jax.random.normal(k3, (3, 3, inter_dim), jnp.float32) * 0.1,
        "dw_b": jax.random.normal(k4, (1, inter_dim), jnp.float32) * 0.1,
        "fc2_w": jax.random.normal(k5, (inter_dim, in_dim), jnp.float32) * 0.1,
        "fc2_b": jax.random.normal(k6, (1, in_dim), jnp.float32) * 0.1,
    }

    x = jax.random.normal(k_x, (B, N, in_dim), jnp.float32)

    # row_block=4 -> 4 row blocks per image: exercises the top-edge, interior
    # and bottom-edge halo paths.
    out = jax.block_until_ready(mixffn_forward(x, H, W, params, row_block=4))
    ref = jax.block_until_ready(mixffn_reference(x, H, W, params))

    assert out.shape == (B, N, in_dim), out.shape
    max_err = float(jnp.max(jnp.abs(out - ref)))
    assert jnp.allclose(out, ref, rtol=1e-4, atol=1e-5), max_err

    print("KERNEL_OK")
</pallas_src>

<mosaic_0001>
module attributes {stable_mosaic.version = 11 : i64} {
  func.func @_mixffn_kernel(%arg0: i32, %arg1: i32, %arg2: memref<1x64x32xf32, #tpu.memory_space<vmem>>, %arg3: memref<1x16x32xf32, #tpu.memory_space<vmem>>, %arg4: memref<1x16x32xf32, #tpu.memory_space<vmem>>, %arg5: memref<32x128xf32, #tpu.memory_space<vmem>>, %arg6: memref<1x128xf32, #tpu.memory_space<vmem>>, %arg7: memref<9x128xf32, #tpu.memory_space<vmem>>, %arg8: memref<1x128xf32, #tpu.memory_space<vmem>>, %arg9: memref<128x32xf32, #tpu.memory_space<vmem>>, %arg10: memref<1x32xf32, #tpu.memory_space<vmem>>, %arg11: memref<1x64x32xf32, #tpu.memory_space<vmem>>, %arg12: memref<96x128xf32, #tpu.memory_space<vmem>>) attributes {dimension_semantics = [#tpu.dimension_semantics<parallel>, #tpu.dimension_semantics<parallel>], iteration_bounds = array<i64: 2, 4>, scalar_prefetch = 0 : i64, scratch_operands = 1 : i64, tpu.core_type = #tpu.core_type<tc>, window_params = [{transform_indices = @transform_0, window_bounds = array<i64: 1, 64, 32>}, {transform_indices = @transform_1, window_bounds = array<i64: 1, 16, 32>}, {transform_indices = @transform_2, window_bounds = array<i64: 1, 16, 32>}, {pipeline_mode = #tpu.pipeline_mode<synchronous>, transform_indices = @transform_3, window_bounds = array<i64: 32, 128>}, {pipeline_mode = #tpu.pipeline_mode<synchronous>, transform_indices = @transform_4, window_bounds = array<i64: 1, 128>}, {pipeline_mode = #tpu.pipeline_mode<synchronous>, transform_indices = @transform_5, window_bounds = array<i64: 9, 128>}, {pipeline_mode = #tpu.pipeline_mode<synchronous>, transform_indices = @transform_6, window_bounds = array<i64: 1, 128>}, {pipeline_mode = #tpu.pipeline_mode<synchronous>, transform_indices = @transform_7, window_bounds = array<i64: 128, 32>}, {pipeline_mode = #tpu.pipeline_mode<synchronous>, transform_indices = @transform_8, window_bounds = array<i64: 1, 32>}, {transform_indices = @transform_9, window_bounds = array<i64: 1, 64, 32>}]} {
    %c0 = arith.constant 0 : index
    %c0_0 = arith.constant 0 : index
    %0 = vector.load %arg5[%c0, %c0_0] : memref<32x128xf32, #tpu.memory_space<vmem>>, vector<32x128xf32>
    %c0_1 = arith.constant 0 : index
    %c0_2 = arith.constant 0 : index
    %1 = vector.load %arg6[%c0_1, %c0_2] : memref<1x128xf32, #tpu.memory_space<vmem>>, vector<1x128xf32>
    %2 = vector.shape_cast %1 : vector<1x128xf32> to vector<128xf32>
    %3 = vector.shape_cast %2 : vector<128xf32> to vector<1x128xf32>
    %c0_3 = arith.constant 0 : index
    %c0_4 = arith.constant 0 : index
    %c0_5 = arith.constant 0 : index
    %4 = vector.load %arg2[%c0_3, %c0_4, %c0_5] : memref<1x64x32xf32, #tpu.memory_space<vmem>>, vector<1x64x32xf32>
    %5 = vector.shape_cast %4 : vector<1x64x32xf32> to vector<64x32xf32>
    %cst = arith.constant dense<0.000000e+00> : vector<64x128xf32>
    %6 = tpu.matmul %5, %0, %cst {dimension_numbers = #tpu.dot_dimension_numbers<[1], [0], [0], [1], [0, 0, 1, 1], [], []>} : vector<64x32xf32>, vector<32x128xf32>, vector<64x128xf32> -> vector<64x128xf32>
    %7 = vector.broadcast %3 : vector<1x128xf32> to vector<64x128xf32>
    %8 = arith.addf %6, %7 : vector<64x128xf32>
    %c16 = arith.constant 16 : index
    %c0_6 = arith.constant 0 : index
    %9 = vector.load %arg12[%c16, %c0_6] : memref<96x128xf32, #tpu.memory_space<vmem>>, vector<64x128xf32>
    tpu.vector_store %arg12[%c16, %c0_6], %8 {strides = array<i32>} : memref<96x128xf32, #tpu.memory_space<vmem>>, vector<64x128xf32>,
    %c0_7 = arith.constant 0 : index
    %c0_8 = arith.constant 0 : index
    %c0_9 = arith.constant 0 : index
    %10 = vector.load %arg3[%c0_7, %c0_8, %c0_9] : memref<1x16x32xf32, #tpu.memory_space<vmem>>, vector<1x16x32xf32>
    %11 = vector.shape_cast %10 : vector<1x16x32xf32> to vector<16x32xf32>
    %cst_10 = arith.constant dense<0.000000e+00> : vector<16x128xf32>
    %12 = tpu.matmul %11, %0, %cst_10 {dimension_numbers = #tpu.dot_dimension_numbers<[1], [0], [0], [1], [0, 0, 1, 1], [], []>} : vector<16x32xf32>, vector<32x128xf32>, vector<16x128xf32> -> vector<16x128xf32>
    %13 = vector.broadcast %3 : vector<1x128xf32> to vector<16x128xf32>
    %14 = arith.addf %12, %13 : vector<16x128xf32>
    %c0_11 = arith.constant 0 : index
    %c0_12 = arith.constant 0 : index
    %15 = vector.load %arg12[%c0_11, %c0_12] : memref<96x128xf32, #tpu.memory_space<vmem>>, vector<16x128xf32>
    tpu.vector_store %arg12[%c0_11, %c0_12], %14 {strides = array<i32>} : memref<96x128xf32, #tpu.memory_space<vmem>>, vector<16x128xf32>,
    %c0_13 = arith.constant 0 : index
    %c0_14 = arith.constant 0 : index
    %c0_15 = arith.constant 0 : index
    %16 = vector.load %arg4[%c0_13, %c0_14, %c0_15] : memref<1x16x32xf32, #tpu.memory_space<vmem>>, vector<1x16x32xf32>
    %17 = vector.shape_cast %16 : vector<1x16x32xf32> to vector<16x32xf32>
    %cst_16 = arith.constant dense<0.000000e+00> : vector<16x128xf32>
    %18 = tpu.matmul %17, %0, %cst_16 {dimension_numbers = #tpu.dot_dimension_numbers<[1], [0], [0], [1], [0, 0, 1, 1], [], []>} : vector<16x32xf32>, vector<32x128xf32>, vector<16x128xf32> -> vector<16x128xf32>
    %19 = vector.broadcast %3 : vector<1x128xf32> to vector<16x128xf32>
    %20 = arith.addf %18, %19 : vector<16x128xf32>
    %c80 = arith.constant 80 : index
    %c0_17 = arith.constant 0 : index
    %21 = vector.load %arg12[%c80, %c0_17] : memref<96x128xf32, #tpu.memory_space<vmem>>, vector<16x128xf32>
    tpu.vector_store %arg12[%c80, %c0_17], %20 {strides = array<i32>} : memref<96x128xf32, #tpu.memory_space<vmem>>, vector<16x128xf32>,
    %c0_i32 = arith.constant 0 : i32
    %22 = arith.cmpi eq, %arg1, %c0_i32 : i32
    %23 = arith.extui %22 : i1 to i32
    %c0_i32_18 = arith.constant 0 : i32
    %24 = arith.cmpi ne, %23, %c0_i32_18 : i32
    scf.if %24 {
      %cst_49 = arith.constant 0.000000e+00 : f32
      %168 = vector.broadcast %cst_49 : f32 to vector<16x128xf32>
      %c0_50 = arith.constant 0 : index
      %c0_51 = arith.constant 0 : index
      %169 = vector.load %arg12[%c0_50, %c0_51] : memref<96x128xf32, #tpu.memory_space<vmem>>, vector<16x128xf32>
      tpu.vector_store %arg12[%c0_50, %c0_51], %168 {strides = array<i32>} : memref<96x128xf32, #tpu.memory_space<vmem>>, vector<16x128xf32>,
    } else {
    }
    %c3_i32 = arith.constant 3 : i32
    %25 = arith.cmpi eq, %arg1, %c3_i32 : i32
    %26 = arith.extui %25 : i1 to i32
    %c0_i32_19 = arith.constant 0 : i32
    %27 = arith.cmpi ne, %26, %c0_i32_19 : i32
    scf.if %27 {
      %cst_49 = arith.constant 0.000000e+00 : f32
      %168 = vector.broadcast %cst_49 : f32 to vector<16x128xf32>
      %c80_50 = arith.constant 80 : index
      %c0_51 = arith.constant 0 : index
      %169 = vector.load %arg12[%c80_50, %c0_51] : memref<96x128xf32, #tpu.memory_space<vmem>>, vector<16x128xf32>
      tpu.vector_store %arg12[%c80_50, %c0_51], %168 {strides = array<i32>} : memref<96x128xf32, #tpu.memory_space<vmem>>, vector<16x128xf32>,
    } else {
    }
    %28 = tpu.iota {dimensions = array<i32: 0>} : vector<96x1xi32>
    %c16_i32 = arith.constant 16 : i32
    %c0_i32_20 = arith.constant 0 : i32
    %29 = arith.cmpi eq, %c16_i32, %c0_i32_20 : i32
    %c1_i32 = arith.constant 1 : i32
    %30 = arith.select %29, %c1_i32, %c16_i32 : i32
    %31 = vector.broadcast %30 : i32 to vector<96x1xi32>
    %32 = arith.remsi %28, %31 : vector<96x1xi32>
    %c0_i32_21 = arith.constant 0 : i32
    %33 = vector.broadcast %c0_i32_21 : i32 to vector<96x1xi32>
    %34 = arith.cmpi ne, %32, %33 : vector<96x1xi32>
    %c0_i32_22 = arith.constant 0 : i32
    %35 = vector.broadcast %c0_i32_22 : i32 to vector<96x1xi32>
    %36 = arith.cmpi slt, %32, %35 : vector<96x1xi32>
    %c0_i32_23 = arith.constant 0 : i32
    %37 = arith.cmpi slt, %30, %c0_i32_23 : i32
    %38 = vector.broadcast %37 : i1 to vector<96x1xi1>
    %39 = vector.broadcast %38 : vector<96x1xi1> to vector<96x1xi1>
    %40 = arith.xori %36, %39 : vector<96x1xi1>
    %41 = arith.andi %40, %34 : vector<96x1xi1>
    %42 = vector.broadcast %30 : i32 to vector<96x1xi32>
    %43 = arith.addi %32, %42 : vector<96x1xi32>
    %44 = arith.select %41, %43, %32 : vector<96x1xi1>, vector<96x1xi32>
    %c1_i32_24 = arith.constant 1 : i32
    %45 = tpu.dynamic_rotate %44 by %c1_i32_24 dim 0 : vector<96x1xi32>, i32 -> vector<96x1xi32>
    %c95_i32 = arith.constant 95 : i32
    %46 = tpu.dynamic_rotate %44 by %c95_i32 dim 0 : vector<96x1xi32>, i32 -> vector<96x1xi32>
    %c1_i32_25 = arith.constant 1 : i32
    %47 = vector.broadcast %c1_i32_25 : i32 to vector<96x1xi32>
    %48 = arith.subi %44, %47 : vector<96x1xi32>
    %49 = arith.cmpi eq, %45, %48 : vector<96x1xi32>
    %50 = arith.extui %49 : vector<96x1xi1> to vector<96x1xi32>
    %51 = arith.sitofp %50 : vector<96x1xi32> to vector<96x1xf32>
    %c1_i32_26 = arith.constant 1 : i32
    %52 = vector.broadcast %c1_i32_26 : i32 to vector<96x1xi32>
    %53 = arith.subi %44, %52 : vector<96x1xi32>
    %54 = arith.cmpi eq, %46, %53 : vector<96x1xi32>
    %55 = arith.extui %54 : vector<96x1xi1> to vector<96x1xi32>
    %56 = arith.sitofp %55 : vector<96x1xi32> to vector<96x1xf32>
    %c1_i32_27 = arith.constant 1 : i32
    %57 = vector.broadcast %c1_i32_27 : i32 to vector<96x1xi32>
    %58 = arith.addi %44, %57 : vector<96x1xi32>
    %59 = arith.cmpi eq, %45, %58 : vector<96x1xi32>
    %60 = arith.extui %59 : vector<96x1xi1> to vector<96x1xi32>
    %61 = arith.sitofp %60 : vector<96x1xi32> to vector<96x1xf32>
    %c1_i32_28 = arith.constant 1 : i32
    %62 = vector.broadcast %c1_i32_28 : i32 to vector<96x1xi32>
    %63 = arith.addi %44, %62 : vector<96x1xi32>
    %64 = arith.cmpi eq, %46, %63 : vector<96x1xi32>
    %65 = arith.extui %64 : vector<96x1xi1> to vector<96x1xi32>
    %66 = arith.sitofp %65 : vector<96x1xi32> to vector<96x1xf32>
    %c0_29 = arith.constant 0 : index
    %c0_30 = arith.constant 0 : index
    %67 = vector.load %arg12[%c0_29, %c0_30] : memref<96x128xf32, #tpu.memory_space<vmem>>, vector<96x128xf32>
    %c1_i32_31 = arith.constant 1 : i32
    %68 = tpu.dynamic_rotate %67 by %c1_i32_31 dim 0 : vector<96x128xf32>, i32 -> vector<96x128xf32>
    %c95_i32_32 = arith.constant 95 : i32
    %69 = tpu.dynamic_rotate %67 by %c95_i32_32 dim 0 : vector<96x128xf32>, i32 -> vector<96x128xf32>
    %70 = vector.broadcast %51 : vector<96x1xf32> to vector<96x128xf32>
    %71 = arith.mulf %68, %70 : vector<96x128xf32>
    %72 = vector.broadcast %56 : vector<96x1xf32> to vector<96x128xf32>
    %73 = arith.mulf %69, %72 : vector<96x128xf32>
    %74 = arith.addf %71, %73 : vector<96x128xf32>
    %75 = vector.broadcast %61 : vector<96x1xf32> to vector<96x128xf32>
    %76 = arith.mulf %68, %75 : vector<96x128xf32>
    %77 = vector.broadcast %66 : vector<96x1xf32> to vector<96x128xf32>
    %78 = arith.mulf %69, %77 : vector<96x128xf32>
    %79 = arith.addf %76, %78 : vector<96x128xf32>
    %c0_33 = arith.constant 0 : index
    %c0_34 = arith.constant 0 : index
    %80 = vector.load %arg7[%c0_33, %c0_34] : memref<9x128xf32, #tpu.memory_space<vmem>>, vector<9x128xf32>
    %c0_35 = arith.constant 0 : index
    %c0_36 = arith.constant 0 : index
    %81 = vector.load %arg8[%c0_35, %c0_36] : memref<1x128xf32, #tpu.memory_space<vmem>>, vector<1x128xf32>
    %82 = vector.shape_cast %81 : vector<1x128xf32> to vector<128xf32>
    %cst_37 = arith.constant 0.000000e+00 : f32
    %83 = vector.broadcast %cst_37 : f32 to vector<64x128xf32>
    %84 = vector.extract_strided_slice %74 {offsets = [0, 0], sizes = [64, 128], strides = [1, 1]} : vector<96x128xf32> to vector<64x128xf32>
    %85 = vector.extract_strided_slice %80 {offsets = [0, 0], sizes = [1, 128], strides = [1, 1]} : vector<9x128xf32> to vector<1x128xf32>
    %86 = vector.shape_cast %85 : vector<1x128xf32> to vector<128xf32>
    %87 = vector.shape_cast %86 : vector<128xf32> to vector<1x128xf32>
    %88 = vector.broadcast %87 : vector<1x128xf32> to vector<64x128xf32>
    %89 = arith.mulf %84, %88 : vector<64x128xf32>
    %90 = arith.addf %83, %89 : vector<64x128xf32>
    %91 = vector.extract_strided_slice %67 {offsets = [0, 0], sizes = [64, 128], strides = [1, 1]} : vector<96x128xf32> to vector<64x128xf32>
    %92 = vector.extract_strided_slice %80 {offsets = [1, 0], sizes = [1, 128], strides = [1, 1]} : vector<9x128xf32> to vector<1x128xf32>
    %93 = vector.shape_cast %92 : vector<1x128xf32> to vector<128xf32>
    %94 = vector.shape_cast %93 : vector<128xf32> to vector<1x128xf32>
    %95 = vector.broadcast %94 : vector<1x128xf32> to vector<64x128xf32>
    %96 = arith.mulf %91, %95 : vector<64x128xf32>
    %97 = arith.addf %90, %96 : vector<64x128xf32>
    %98 = vector.extract_strided_slice %79 {offsets = [0, 0], sizes = [64, 128], strides = [1, 1]} : vector<96x128xf32> to vector<64x128xf32>
    %99 = vector.extract_strided_slice %80 {offsets = [2, 0], sizes = [1, 128], strides = [1, 1]} : vector<9x128xf32> to vector<1x128xf32>
    %100 = vector.shape_cast %99 : vector<1x128xf32> to vector<128xf32>
    %101 = vector.shape_cast %100 : vector<128xf32> to vector<1x128xf32>
    %102 = vector.broadcast %101 : vector<1x128xf32> to vector<64x128xf32>
    %103 = arith.mulf %98, %102 : vector<64x128xf32>
    %104 = arith.addf %97, %103 : vector<64x128xf32>
    %105 = vector.extract_strided_slice %74 {offsets = [16, 0], sizes = [64, 128], strides = [1, 1]} : vector<96x128xf32> to vector<64x128xf32>
    %106 = vector.extract_strided_slice %80 {offsets = [3, 0], sizes = [1, 128], strides = [1, 1]} : vector<9x128xf32> to vector<1x128xf32>
    %107 = vector.shape_cast %106 : vector<1x128xf32> to vector<128xf32>
    %108 = vector.shape_cast %107 : vector<128xf32> to vector<1x128xf32>
    %109 = vector.broadcast %108 : vector<1x128xf32> to vector<64x128xf32>
    %110 = arith.mulf %105, %109 : vector<64x128xf32>
    %111 = arith.addf %104, %110 : vector<64x128xf32>
    %112 = vector.extract_strided_slice %67 {offsets = [16, 0], sizes = [64, 128], strides = [1, 1]} : vector<96x128xf32> to vector<64x128xf32>
    %113 = vector.extract_strided_slice %80 {offsets = [4, 0], sizes = [1, 128], strides = [1, 1]} : vector<9x128xf32> to vector<1x128xf32>
    %114 = vector.shape_cast %113 : vector<1x128xf32> to vector<128xf32>
    %115 = vector.shape_cast %114 : vector<128xf32> to vector<1x128xf32>
    %116 = vector.broadcast %115 : vector<1x128xf32> to vector<64x128xf32>
    %117 = arith.mulf %112, %116 : vector<64x128xf32>
    %118 = arith.addf %111, %117 : vector<64x128xf32>
    %119 = vector.extract_strided_slice %79 {offsets = [16, 0], sizes = [64, 128], strides = [1, 1]} : vector<96x128xf32> to vector<64x128xf32>
    %120 = vector.extract_strided_slice %80 {offsets = [5, 0], sizes = [1, 128], strides = [1, 1]} : vector<9x128xf32> to vector<1x128xf32>
    %121 = vector.shape_cast %120 : vector<1x128xf32> to vector<128xf32>
    %122 = vector.shape_cast %121 : vector<128xf32> to vector<1x128xf32>
    %123 = vector.broadcast %122 : vector<1x128xf32> to vector<64x128xf32>
    %124 = arith.mulf %119, %123 : vector<64x128xf32>
    %125 = arith.addf %118, %124 : vector<64x128xf32>
    %126 = vector.extract_strided_slice %74 {offsets = [32, 0], sizes = [64, 128], strides = [1, 1]} : vector<96x128xf32> to vector<64x128xf32>
    %127 = vector.extract_strided_slice %80 {offsets = [6, 0], sizes = [1, 128], strides = [1, 1]} : vector<9x128xf32> to vector<1x128xf32>
    %128 = vector.shape_cast %127 : vector<1x128xf32> to vector<128xf32>
    %129 = vector.shape_cast %128 : vector<128xf32> to vector<1x128xf32>
    %130 = vector.broadcast %129 : vector<1x128xf32> to vector<64x128xf32>
    %131 = arith.mulf %126, %130 : vector<64x128xf32>
    %132 = arith.addf %125, %131 : vector<64x128xf32>
    %133 = vector.extract_strided_slice %67 {offsets = [32, 0], sizes = [64, 128], strides = [1, 1]} : vector<96x128xf32> to vector<64x128xf32>
    %134 = vector.extract_strided_slice %80 {offsets = [7, 0], sizes = [1, 128], strides = [1, 1]} : vector<9x128xf32> to vector<1x128xf32>
    %135 = vector.shape_cast %134 : vector<1x128xf32> to vector<128xf32>
    %136 = vector.shape_cast %135 : vector<128xf32> to vector<1x128xf32>
    %137 = vector.broadcast %136 : vector<1x128xf32> to vector<64x128xf32>
    %138 = arith.mulf %133, %137 : vector<64x128xf32>
    %139 = arith.addf %132, %138 : vector<64x128xf32>
    %140 = vector.extract_strided_slice %79 {offsets = [32, 0], sizes = [64, 128], strides = [1, 1]} : vector<96x128xf32> to vector<64x128xf32>
    %141 = vector.extract_strided_slice %80 {offsets = [8, 0], sizes = [1, 128], strides = [1, 1]} : vector<9x128xf32> to vector<1x128xf32>
    %142 = vector.shape_cast %141 : vector<1x128xf32> to vector<128xf32>
    %143 = vector.shape_cast %142 : vector<128xf32> to vector<1x128xf32>
    %144 = vector.broadcast %143 : vector<1x128xf32> to vector<64x128xf32>
    %145 = arith.mulf %140, %144 : vector<64x128xf32>
    %146 = arith.addf %139, %145 : vector<64x128xf32>
    %147 = vector.shape_cast %82 : vector<128xf32> to vector<1x128xf32>
    %148 = vector.broadcast %147 : vector<1x128xf32> to vector<64x128xf32>
    %149 = arith.addf %146, %148 : vector<64x128xf32>
    %cst_38 = arith.constant 5.000000e-01 : f32
    %150 = vector.broadcast %cst_38 : f32 to vector<64x128xf32>
    %151 = arith.mulf %150, %149 : vector<64x128xf32>
    %cst_39 = arith.constant 0.707106769 : f32
    %152 = vector.broadcast %cst_39 : f32 to vector<64x128xf32>
    %153 = arith.mulf %149, %152 : vector<64x128xf32>
    %154 = math.erf %153 : vector<64x128xf32>
    %cst_40 = arith.constant 1.000000e+00 : f32
    %155 = vector.broadcast %cst_40 : f32 to vector<64x128xf32>
    %156 = arith.addf %155, %154 : vector<64x128xf32>
    %157 = arith.mulf %151, %156 : vector<64x128xf32>
    %c0_41 = arith.constant 0 : index
    %c0_42 = arith.constant 0 : index
    %158 = vector.load %arg9[%c0_41, %c0_42] : memref<128x32xf32, #tpu.memory_space<vmem>>, vector<128x32xf32>
    %cst_43 = arith.constant dense<0.000000e+00> : vector<64x32xf32>
    %159 = tpu.matmul %157, %158, %cst_43 {dimension_numbers = #tpu.dot_dimension_numbers<[1], [0], [0], [1], [0, 0, 1, 1], [], []>} : vector<64x128xf32>, vector<128x32xf32>, vector<64x32xf32> -> vector<64x32xf32>
    %c0_44 = arith.constant 0 : index
    %c0_45 = arith.constant 0 : index
    %160 = vector.load %arg10[%c0_44, %c0_45] : memref<1x32xf32, #tpu.memory_space<vmem>>, vector<1x32xf32>
    %161 = vector.shape_cast %160 : vector<1x32xf32> to vector<32xf32>
    %162 = vector.shape_cast %161 : vector<32xf32> to vector<1x32xf32>
    %163 = vector.broadcast %162 : vector<1x32xf32> to vector<64x32xf32>
    %164 = arith.addf %159, %163 : vector<64x32xf32>
    %c0_46 = arith.constant 0 : index
    %c0_47 = arith.constant 0 : index
    %c0_48 = arith.constant 0 : index
    %165 = vector.load %arg11[%c0_46, %c0_47, %c0_48] : memref<1x64x32xf32, #tpu.memory_space<vmem>>, vector<1x64x32xf32>
    %166 = vector.shape_cast %165 : vector<1x64x32xf32> to vector<64x32xf32>
    %167 = vector.shape_cast %164 : vector<64x32xf32> to vector<1x64x32xf32>
    tpu.vector_store %arg11[%c0_46, %c0_47, %c0_48], %167 {strides = array<i32>} : memref<1x64x32xf32, #tpu.memory_space<vmem>>, vector<1x64x32xf32>,
    return
  }
  func.func @transform_0(%arg0: i32, %arg1: i32) -> (i32, i32, i32) {
    %c0_i32 = arith.constant 0 : i32
    %c0_i32_0 = arith.constant 0 : i32
    return %arg0, %arg1, %c0_i32 : i32, i32, i32
  }
  func.func @transform_1(%arg0: i32, %arg1: i32) -> (i32, i32, i32) {
    %c4_i32 = arith.constant 4 : i32
    %0 = arith.muli %arg1, %c4_i32 : i32
    %c1_i32 = arith.constant 1 : i32
    %1 = arith.subi %0, %c1_i32 : i32
    %c0_i32 = arith.constant 0 : i32
    %2 = arith.maxsi %1, %c0_i32 : i32
    %c0_i32_0 = arith.constant 0 : i32
    %c0_i32_1 = arith.constant 0 : i32
    return %arg0, %2, %c0_i32_0 : i32, i32, i32
  }
  func.func @transform_2(%arg0: i32, %arg1: i32) -> (i32, i32, i32) {
    %c1_i32 = arith.constant 1 : i32
    %0 = arith.addi %arg1, %c1_i32 : i32
    %c4_i32 = arith.constant 4 : i32
    %1 = arith.muli %0, %c4_i32 : i32
    %c15_i32 = arith.constant 15 : i32
    %2 = arith.minsi %1, %c15_i32 : i32
    %c0_i32 = arith.constant 0 : i32
    %c0_i32_0 = arith.constant 0 : i32
    return %arg0, %2, %c0_i32 : i32, i32, i32
  }
  func.func @transform_3(%arg0: i32, %arg1: i32) -> (i32, i32) {
    %c0_i32 = arith.constant 0 : i32
    %c0_i32_0 = arith.constant 0 : i32
    %c0_i32_1 = arith.constant 0 : i32
    return %c0_i32, %c0_i32_0 : i32, i32
  }
  func.func @transform_4(%arg0: i32, %arg1: i32) -> (i32, i32) {
    %c0_i32 = arith.constant 0 : i32
    %c0_i32_0 = arith.constant 0 : i32
    %c0_i32_1 = arith.constant 0 : i32
    return %c0_i32, %c0_i32_0 : i32, i32
  }
  func.func @transform_5(%arg0: i32, %arg1: i32) -> (i32, i32) {
    %c0_i32 = arith.constant 0 : i32
    %c0_i32_0 = arith.constant 0 : i32
    %c0_i32_1 = arith.constant 0 : i32
    return %c0_i32, %c0_i32_0 : i32, i32
  }
  func.func @transform_6(%arg0: i32, %arg1: i32) -> (i32, i32) {
    %c0_i32 = arith.constant 0 : i32
    %c0_i32_0 = arith.constant 0 : i32
    %c0_i32_1 = arith.constant 0 : i32
    return %c0_i32, %c0_i32_0 : i32, i32
  }
  func.func @transform_7(%arg0: i32, %arg1: i32) -> (i32, i32) {
    %c0_i32 = arith.constant 0 : i32
    %c0_i32_0 = arith.constant 0 : i32
    %c0_i32_1 = arith.constant 0 : i32
    return %c0_i32, %c0_i32_0 : i32, i32
  }
  func.func @transform_8(%arg0: i32, %arg1: i32) -> (i32, i32) {
    %c0_i32 = arith.constant 0 : i32
    %c0_i32_0 = arith.constant 0 : i32
    %c0_i32_1 = arith.constant 0 : i32
    return %c0_i32, %c0_i32_0 : i32, i32
  }
  func.func @transform_9(%arg0: i32, %arg1: i32) -> (i32, i32, i32) {
    %c0_i32 = arith.constant 0 : i32
    %c0_i32_0 = arith.constant 0 : i32
    return %arg0, %arg1, %c0_i32 : i32, i32, i32
  }
}

</mosaic_0001>

<llo_original>
// kernel: tpu_custom_call.1
$region0: #{tpu_custom_call.1}
  #allocation0 [shape = 'u32[]', space=smem, size = 0x4, offset = 0x4, fixed_abs, tag = 'smem constant byte address 0x4 - core index']
  #allocation1 [shape = 'u32[72,128]{1,0:T(1,128)}', space=vmem, size = 0x9000, scoped, tag = 'internal scratch']
  #allocation2 [shape = 'f32[96,128]{1,0:T(8,128)}', space=vmem, size = 0xc000, scoped, tag = 'scratch operand']
  %s0 = inlined_call_operand.vmem [shape: f32[2,256,32], index: 0, kind: input, shape index: {}]
  %s1 = inlined_call_operand.vmem [shape: f32[2,256,32], index: 1, kind: input, shape index: {}]
  %s2 = inlined_call_operand.vmem [shape: f32[2,256,32], index: 2, kind: input, shape index: {}]
  %s3 = inlined_call_operand.vmem [shape: f32[32,128], index: 3, kind: input, shape index: {}]
  %s4 = inlined_call_operand.vmem [shape: f32[1,128], index: 4, kind: input, shape index: {}]
  %s5 = inlined_call_operand.vmem [shape: f32[9,128], index: 5, kind: input, shape index: {}]
  %s6 = inlined_call_operand.vmem [shape: f32[1,128], index: 6, kind: input, shape index: {}]
  %s7 = inlined_call_operand.vmem [shape: f32[128,32], index: 7, kind: input, shape index: {}]
  %s8 = inlined_call_operand.vmem [shape: f32[1,32], index: 8, kind: input, shape index: {}]
  %s9 = inlined_call_operand.vmem [shape: f32[2,256,32], index: 9, kind: output, shape index: {}]
  %s10 = sld [smem:[#allocation0]]
  $region77: #{tpu_custom_call.1} parent=0
    _
  %s12 = ssub.s32 1, %s10
  %s13 = scalar_select 0, %s12, %s10
  loop: start=0, step=1, limit=10
  $region2: #{tpu_custom_call.1} parent=0 // loop_pre_header
    _
  $region3: #{tpu_custom_call.1} parent=0 // loop_header
    %s15 = sphi 0, %s19
    %p16 = scmp.ge.s32.totalorder %s15, 10
    %s22 = sphi 0, %s34
    %s23 = sphi 0, %s30
    %s24 = sphi 0, %s22
    %s25 = sphi 0, %s23
    %s26 = sphi 0, %s24
    %s27 = sphi 0, %s25
    %s39 = sphi 0, %s41
    %s42 = sphi 0, %s39
    %s43 = sphi 0, %s42
    %s59 = sphi 0, %s43
    %s75 = sphi 0, %s77
    %s78 = sphi 0, %s75
    %s79 = sphi 0, %s78
    %s95 = sphi 0, %s79
    %s111 = sphi 0, %s113
    %s114 = sphi 0, %s111
    %s115 = sphi 0, %s114
    %s131 = sphi 0, %s115
    %s135 = sphi 0, %s135
    %s137 = sphi 0, %s135
    %s138 = sphi 0, %s137
    %s152 = sphi 0, %s138
    %s156 = sphi 0, %s156
    %s158 = sphi 0, %s156
    %s159 = sphi 0, %s158
    %s173 = sphi 0, %s159
    %s177 = sphi 0, %s177
    %s179 = sphi 0, %s177
    %s180 = sphi 0, %s179
    %s194 = sphi 0, %s180
    %s198 = sphi 0, %s198
    %s200 = sphi 0, %s198
    %s201 = sphi 0, %s200
    %s215 = sphi 0, %s201
    %s219 = sphi 0, %s219
    %s221 = sphi 0, %s219
    %s222 = sphi 0, %s221
    %s236 = sphi 0, %s222
    %s240 = sphi 0, %s240
    %s242 = sphi 0, %s240
    %s243 = sphi 0, %s242
    %s257 = sphi 0, %s243
    %s265 = sphi 0, %s267
    %s268 = sphi 0, %s265
    %s269 = sphi 0, %s268
    %s285 = sphi 0, %s269
  $region4: #{tpu_custom_call.1} parent=0 // loop_header_branch
    %18 = sbr.rel (%p16) target = $region8
  $region5: #{tpu_custom_call.1} parent=0 // loop_body
    %s20 = ssub.s32 %s15, 1
    %s21 = ssub.s32 %s15, 2
    %s28 = sadd.s32 1, %s23
    %p29 = scmp.ge.s32.totalorder %s28, 4
    %s30 = scalar_select %p29, 0, %s28
    %s31 = sadd.s32 1, %s22
    %s32 = scalar_select %p29, %s31, %s22
    %p33 = scmp.ge.s32.totalorder %s32, 2
    %s34 = scalar_select %p33, 0, %s32
    %s35 = ssub.s32 %s22, %s34
    %s36 = ssub.s32 %s23, %s30
    %s37 = sor.u32 %s35, %s36
    %p38 = scmp.eq.s32.totalorder %s37, 0
    %s40 = sadd.s32 %s39, 1
    %s41 = scalar_select %p38, %s39, %s40
    %p44 = pneg %p38
    %p45 = scmp.eq.s32.totalorder %s15, 7
    %p46 = por %p44, %p45
    %p47 = scmp.ne.s32.totalorder %s39, %s42
    %p48 = scmp.eq.s32.totalorder %s15, 0
    %p49 = por %p47, %p48
    %p50 = scmp.ne.s32.totalorder %s39, %s42
    %p51 = scmp.eq.s32.totalorder %s20, 7
    %p52 = por %p50, %p51
    %p53 = scmp.ne.s32.totalorder %s42, %s43
    %p54 = scmp.eq.s32.totalorder %s20, 0
    %p55 = por %p53, %p54
    %p56 = scmp.ne.s32.totalorder %s42, %s43
    %p57 = scmp.eq.s32.totalorder %s21, 7
    %p58 = por %p56, %p57
    %p60 = scmp.ne.s32.totalorder %s43, %s59
    %p61 = scmp.eq.s32.totalorder %s21, 0
    %p62 = por %p60, %p61
    %s63 = smul.u32 %s23, 4
    %s64 = ssub.s32 %s63, 1
    %p65 = scmp.gt.s32.totalorder %s64, 0
    %s66 = scalar_select %p65, %s64, 0
    %s67 = smul.u32 %s30, 4
    %s68 = ssub.s32 %s67, 1
    %p69 = scmp.gt.s32.totalorder %s68, 0
    %s70 = scalar_select %p69, %s68, 0
    %s71 = ssub.s32 %s22, %s34
    %s72 = ssub.s32 %s66, %s70
    %s73 = sor.u32 %s71, %s72
    %p74 = scmp.eq.s32.totalorder %s73, 0
    %s76 = sadd.s32 %s75, 1
    %s77 = scalar_select %p74, %s75, %s76
    %p80 = pneg %p74
    %p81 = scmp.eq.s32.totalorder %s15, 7
    %p82 = por %p80, %p81
    %p83 = scmp.ne.s32.totalorder %s75, %s78
    %p84 = scmp.eq.s32.totalorder %s15, 0
    %p85 = por %p83, %p84
    %p86 = scmp.ne.s32.totalorder %s75, %s78
    %p87 = scmp.eq.s32.totalorder %s20, 7
    %p88 = por %p86, %p87
    %p89 = scmp.ne.s32.totalorder %s78, %s79
    %p90 = scmp.eq.s32.totalorder %s20, 0
    %p91 = por %p89, %p90
    %p92 = scmp.ne.s32.totalorder %s78, %s79
    %p93 = scmp.eq.s32.totalorder %s21, 7
    %p94 = por %p92, %p93
    %p96 = scmp.ne.s32.totalorder %s79, %s95
    %p97 = scmp.eq.s32.totalorder %s21, 0
    %p98 = por %p96, %p97
    %s99 = sadd.s32 %s23, 1
    %s100 = smul.u32 %s99, 4
    %p101 = scmp.lt.s32.totalorder %s100, 15
    %s102 = scalar_select %p101, %s100, 15
    %s103 = sadd.s32 %s30, 1
    %s104 = smul.u32 %s103, 4
    %p105 = scmp.lt.s32.totalorder %s104, 15
    %s106 = scalar_select %p105, %s104, 15
    %s107 = ssub.s32 %s22, %s34
    %s108 = ssub.s32 %s102, %s106
    %s109 = sor.u32 %s107, %s108
    %p110 = scmp.eq.s32.totalorder %s109, 0
    %s112 = sadd.s32 %s111, 1
    %s113 = scalar_select %p110, %s111, %s112
    %p116 = pneg %p110
    %p117 = scmp.eq.s32.totalorder %s15, 7
    %p118 = por %p116, %p117
    %p119 = scmp.ne.s32.totalorder %s111, %s114
    %p120 = scmp.eq.s32.totalorder %s15, 0
    %p121 = por %p119, %p120
    %p122 = scmp.ne.s32.totalorder %s111, %s114
    %p123 = scmp.eq.s32.totalorder %s20, 7
    %p124 = por %p122, %p123
    %p125 = scmp.ne.s32.totalorder %s114, %s115
    %p126 = scmp.eq.s32.totalorder %s20, 0
    %p127 = por %p125, %p126
    %p128 = scmp.ne.s32.totalorder %s114, %s115
    %p129 = scmp.eq.s32.totalorder %s21, 7
    %p130 = por %p128, %p129
    %p132 = scmp.ne.s32.totalorder %s115, %s131
    %p133 = scmp.eq.s32.totalorder %s21, 0
    %p134 = por %p132, %p133
    %s136 = sadd.s32 %s135, 1
    %p139 = scmp.eq.s32.totalorder %s15, 7
    %p140 = scmp.ne.s32.totalorder %s135, %s137
    %p141 = scmp.eq.s32.totalorder %s15, 0
    %p142 = por %p140, %p141
    %p143 = scmp.ne.s32.totalorder %s135, %s137
    %p144 = scmp.eq.s32.totalorder %s20, 7
    %p145 = por %p143, %p144
    %p146 = scmp.ne.s32.totalorder %s137, %s138
    %p147 = scmp.eq.s32.totalorder %s20, 0
    %p148 = por %p146, %p147
    %p149 = scmp.ne.s32.totalorder %s137, %s138
    %p150 = scmp.eq.s32.totalorder %s21, 7
    %p151 = por %p149, %p150
    %p153 = scmp.ne.s32.totalorder %s138, %s152
    %p154 = scmp.eq.s32.totalorder %s21, 0
    %p155 = por %p153, %p154
    %s157 = sadd.s32 %s156, 1
    %p160 = scmp.eq.s32.totalorder %s15, 7
    %p161 = scmp.ne.s32.totalorder %s156, %s158
    %p162 = scmp.eq.s32.totalorder %s15, 0
    %p163 = por %p161, %p162
    %p164 = scmp.ne.s32.totalorder %s156, %s158
    %p165 = scmp.eq.s32.totalorder %s20, 7
    %p166 = por %p164, %p165
    %p167 = scmp.ne.s32.totalorder %s158, %s159
    %p168 = scmp.eq.s32.totalorder %s20, 0
    %p169 = por %p167, %p168
    %p170 = scmp.ne.s32.totalorder %s158, %s159
    %p171 = scmp.eq.s32.totalorder %s21, 7
    %p172 = por %p170, %p171
    %p174 = scmp.ne.s32.totalorder %s159, %s173
    %p175 = scmp.eq.s32.totalorder %s21, 0
    %p176 = por %p174, %p175
    %s178 = sadd.s32 %s177, 1
    %p181 = scmp.eq.s32.totalorder %s15, 7
    %p182 = scmp.ne.s32.totalorder %s177, %s179
    %p183 = scmp.eq.s32.totalorder %s15, 0
    %p184 = por %p182, %p183
    %p185 = scmp.ne.s32.totalorder %s177, %s179
    %p186 = scmp.eq.s32.totalorder %s20, 7
    %p187 = por %p185, %p186
    %p188 = scmp.ne.s32.totalorder %s179, %s180
    %p189 = scmp.eq.s32.totalorder %s20, 0
    %p190 = por %p188, %p189
    %p191 = scmp.ne.s32.totalorder %s179, %s180
    %p192 = scmp.eq.s32.totalorder %s21, 7
    %p193 = por %p191, %p192
    %p195 = scmp.ne.s32.totalorder %s180, %s194
    %p196 = scmp.eq.s32.totalorder %s21, 0
    %p197 = por %p195, %p196
    %s199 = sadd.s32 %s198, 1
    %p202 = scmp.eq.s32.totalorder %s15, 7
    %p203 = scmp.ne.s32.totalorder %s198, %s200
    %p204 = scmp.eq.s32.totalorder %s15, 0
    %p205 = por %p203, %p204
    %p206 = scmp.ne.s32.totalorder %s198, %s200
    %p207 = scmp.eq.s32.totalorder %s20, 7
    %p208 = por %p206, %p207
    %p209 = scmp.ne.s32.totalorder %s200, %s201
    %p210 = scmp.eq.s32.totalorder %s20, 0
    %p211 = por %p209, %p210
    %p212 = scmp.ne.s32.totalorder %s200, %s201
    %p213 = scmp.eq.s32.totalorder %s21, 7
    %p214 = por %p212, %p213
    %p216 = scmp.ne.s32.totalorder %s201, %s215
    %p217 = scmp.eq.s32.totalorder %s21, 0
    %p218 = por %p216, %p217
    %s220 = sadd.s32 %s219, 1
    %p223 = scmp.eq.s32.totalorder %s15, 7
    %p224 = scmp.ne.s32.totalorder %s219, %s221
    %p225 = scmp.eq.s32.totalorder %s15, 0
    %p226 = por %p224, %p225
    %p227 = scmp.ne.s32.totalorder %s219, %s221
    %p228 = scmp.eq.s32.totalorder %s20, 7
    %p229 = por %p227, %p228
    %p230 = scmp.ne.s32.totalorder %s221, %s222
    %p231 = scmp.eq.s32.totalorder %s20, 0
    %p232 = por %p230, %p231
    %p233 = scmp.ne.s32.totalorder %s221, %s222
    %p234 = scmp.eq.s32.totalorder %s21, 7
    %p235 = por %p233, %p234
    %p237 = scmp.ne.s32.totalorder %s222, %s236
    %p238 = scmp.eq.s32.totalorder %s21, 0
    %p239 = por %p237, %p238
    %s241 = sadd.s32 %s240, 1
    %p244 = scmp.eq.s32.totalorder %s15, 7
    %p245 = scmp.ne.s32.totalorder %s240, %s242
    %p246 = scmp.eq.s32.totalorder %s15, 0
    %p247 = por %p245, %p246
    %p248 = scmp.ne.s32.totalorder %s240, %s242
    %p249 = scmp.eq.s32.totalorder %s20, 7
    %p250 = por %p248, %p249
    %p251 = scmp.ne.s32.totalorder %s242, %s243
    %p252 = scmp.eq.s32.totalorder %s20, 0
    %p253 = por %p251, %p252
    %p254 = scmp.ne.s32.totalorder %s242, %s243
    %p255 = scmp.eq.s32.totalorder %s21, 7
    %p256 = por %p254, %p255
    %p258 = scmp.ne.s32.totalorder %s243, %s257
    %p259 = scmp.eq.s32.totalorder %s21, 0
    %p260 = por %p258, %p259
    %s261 = ssub.s32 %s22, %s34
    %s262 = ssub.s32 %s23, %s30
    %s263 = sor.u32 %s261, %s262
    %p264 = scmp.eq.s32.totalorder %s263, 0
    %s266 = sadd.s32 %s265, 1
    %s267 = scalar_select %p264, %s265, %s266
    %p270 = pneg %p264
    %p271 = scmp.eq.s32.totalorder %s15, 7
    %p272 = por %p270, %p271
    %p273 = scmp.ne.s32.totalorder %s265, %s268
    %p274 = scmp.eq.s32.totalorder %s15, 0
    %p275 = por %p273, %p274
    %p276 = scmp.ne.s32.totalorder %s265, %s268
    %p277 = scmp.eq.s32.totalorder %s20, 7
    %p278 = por %p276, %p277
    %p279 = scmp.ne.s32.totalorder %s268, %s269
    %p280 = scmp.eq.s32.totalorder %s20, 0
    %p281 = por %p279, %p280
    %p282 = scmp.ne.s32.totalorder %s268, %s269
    %p283 = scmp.eq.s32.totalorder %s21, 7
    %p284 = por %p282, %p283
    %p286 = scmp.ne.s32.totalorder %s269, %s285
    %p287 = scmp.eq.s32.totalorder %s21, 0
    %p288 = por %p286, %p287
    %p289 = scmp.le.s32.totalorder 1, %s15
    %p290 = scmp.lt.s32.totalorder %s15, 9
    %p291 = pnand %p289, %p290
    %p292 = pneg %p291
    // Predicated region
    $region9: #{tpu_custom_call.1} parent=5 // pred_check
      _
    $region10: #{tpu_custom_call.1} parent=5 // pred_check_branch
      %294 = sbr.rel (%p291) target = $region12
    $region11: #{tpu_custom_call.1} parent=5 // pred_region
      %s295 = ssub.s32 %s15, 1
      // Predicated region
      $region13: #{tpu_custom_call.1} parent=11 // pred_check
        %p296 = pneg %p148
      $region14: #{tpu_custom_call.1} parent=11 // pred_check_branch
        %298 = sbr.rel (%p296) target = $region16
      $region15: #{tpu_custom_call.1} parent=11 // pred_region
        _
      $region16: #{tpu_custom_call.1} parent=11 // pred_fallthru
        _
      // Predicated region
      $region17: #{tpu_custom_call.1} parent=11 // pred_check
        %p299 = pneg %p169
      $region18: #{tpu_custom_call.1} parent=11 // pred_check_branch
        %301 = sbr.rel (%p299) target = $region20
      $region19: #{tpu_custom_call.1} parent=11 // pred_region
        _
      $region20: #{tpu_custom_call.1} parent=11 // pred_fallthru
        _
      // Predicated region
      $region21: #{tpu_custom_call.1} parent=11 // pred_check
        %p302 = pneg %p190
      $region22: #{tpu_custom_call.1} parent=11 // pred_check_branch
        %304 = sbr.rel (%p302) target = $region24
      $region23: #{tpu_custom_call.1} parent=11 // pred_region
        _
      $region24: #{tpu_custom_call.1} parent=11 // pred_fallthru
        _
      // Predicated region
      $region25: #{tpu_custom_call.1} parent=11 // pred_check
        %p305 = pneg %p211
      $region26: #{tpu_custom_call.1} parent=11 // pred_check_branch
        %307 = sbr.rel (%p305) target = $region28
      $region27: #{tpu_custom_call.1} parent=11 // pred_region
        _
      $region28: #{tpu_custom_call.1} parent=11 // pred_fallthru
        _
      // Predicated region
      $region29: #{tpu_custom_call.1} parent=11 // pred_check
        %p308 = pneg %p232
      $region30: #{tpu_custom_call.1} parent=11 // pred_check_branch
        %310 = sbr.rel (%p308) target = $region32
      $region31: #{tpu_custom_call.1} parent=11 // pred_region
        _
      $region32: #{tpu_custom_call.1} parent=11 // pred_fallthru
        _
      // Predicated region
      $region33: #{tpu_custom_call.1} parent=11 // pred_check
        %p311 = pneg %p253
      $region34: #{tpu_custom_call.1} parent=11 // pred_check_branch
        %313 = sbr.rel (%p311) target = $region36
      $region35: #{tpu_custom_call.1} parent=11 // pred_region
        _
      $region36: #{tpu_custom_call.1} parent=11 // pred_fallthru
        _
    $region12: #{tpu_custom_call.1} parent=5 // pred_fallthru
      _
    %p314 = scmp.lt.s32.totalorder %s15, 8
    // Predicated region
    $region37: #{tpu_custom_call.1} parent=5 // pred_check
      %p315 = pneg %p314
    $region38: #{tpu_custom_call.1} parent=5 // pred_check_branch
      %317 = sbr.rel (%p315) target = $region40
    $region39: #{tpu_custom_call.1} parent=5 // pred_region
      // Predicated region
      $region41: #{tpu_custom_call.1} parent=39 // pred_check
        %p318 = pneg %p49
      $region42: #{tpu_custom_call.1} parent=39 // pred_check_branch
        %320 = sbr.rel (%p318) target = $region44
      $region43: #{tpu_custom_call.1} parent=39 // pred_region
        %s321 = smul.u32 8, %s23
        %p322 = scmp.lt.s32.totalorder %s22, 1
        %s323 = scalar_select %p322, %s22, 1
        %p324 = scmp.lt.s32.totalorder %s321, 31
        %s325 = scalar_select %p324, %s321, 31
        %s326 = smul.addr %s323, 32
        %s327 = sadd.s32 %s325, %s326
        %s328 = smul.addr %s327, 8
        %s329 = scalar_lea.vmem %s0, %s328
        %s330 = smul.u32 8, %s23
      $region44: #{tpu_custom_call.1} parent=39 // pred_fallthru
        _
      // Predicated region
      $region45: #{tpu_custom_call.1} parent=39 // pred_check
        %p331 = pneg %p85
      $region46: #{tpu_custom_call.1} parent=39 // pred_check_branch
        %333 = sbr.rel (%p331) target = $region48
      $region47: #{tpu_custom_call.1} parent=39 // pred_region
        %s334 = smul.u32 %s23, 4
        %s335 = ssub.s32 %s334, 1
        %p336 = scmp.gt.s32.totalorder %s335, 0
        %s337 = scalar_select %p336, %s335, 0
        %s338 = smul.u32 2, %s337
        %p339 = scmp.lt.s32.totalorder %s22, 1
        %s340 = scalar_select %p339, %s22, 1
        %p341 = scmp.lt.s32.totalorder %s338, 31
        %s342 = scalar_select %p341, %s338, 31
        %s343 = smul.addr %s340, 32
        %s344 = sadd.s32 %s342, %s343
        %s345 = smul.addr %s344, 8
        %s346 = scalar_lea.vmem %s1, %s345
        %s347 = smul.u32 %s23, 4
        %s348 = ssub.s32 %s347, 1
        %p349 = scmp.gt.s32.totalorder %s348, 0
        %s350 = scalar_select %p349, %s348, 0
        %s351 = smul.u32 2, %s350
      $region48: #{tpu_custom_call.1} parent=39 // pred_fallthru
        _
      // Predicated region
      $region49: #{tpu_custom_call.1} parent=39 // pred_check
        %p352 = pneg %p121
      $region50: #{tpu_custom_call.1} parent=39 // pred_check_branch
        %354 = sbr.rel (%p352) target = $region52
      $region51: #{tpu_custom_call.1} parent=39 // pred_region
        %s355 = sadd.s32 %s23, 1
        %s356 = smul.u32 %s355, 4
        %p357 = scmp.lt.s32.totalorder %s356, 15
        %s358 = scalar_select %p357, %s356, 15
        %s359 = smul.u32 2, %s358
        %p360 = scmp.lt.s32.totalorder %s22, 1
        %s361 = scalar_select %p360, %s22, 1
        %p362 = scmp.lt.s32.totalorder %s359, 31
        %s363 = scalar_select %p362, %s359, 31
        %s364 = smul.addr %s361, 32
        %s365 = sadd.s32 %s363, %s364
        %s366 = smul.addr %s365, 8
        %s367 = scalar_lea.vmem %s2, %s366
        %s368 = sadd.s32 %s23, 1
        %s369 = smul.u32 %s368, 4
        %p370 = scmp.lt.s32.totalorder %s369, 15
        %s371 = scalar_select %p370, %s369, 15
        %s372 = smul.u32 2, %s371
      $region52: #{tpu_custom_call.1} parent=39 // pred_fallthru
        _
    $region40: #{tpu_custom_call.1} parent=5 // pred_fallthru
      _
    %p373 = scmp.le.s32.totalorder 1, %s15
    %p374 = scmp.lt.s32.totalorder %s15, 9
    %p375 = pnand %p373, %p374
    %p376 = pneg %p375
    // Predicated region
    $region53: #{tpu_custom_call.1} parent=5 // pred_check
      _
    $region54: #{tpu_custom_call.1} parent=5 // pred_check_branch
      %378 = sbr.rel (%p375) target = $region56
    $region55: #{tpu_custom_call.1} parent=5 // pred_region
      %s379 = ssub.s32 %s15, 1
      %s380 = smul.u32 8, %s25
      %p381 = scmp.lt.s32.totalorder %s24, 1
      %s382 = scalar_select %p381, %s24, 1
      %p383 = scmp.lt.s32.totalorder %s380, 31
      %s384 = scalar_select %p383, %s380, 31
      %s385 = smul.addr %s382, 32
      %s386 = sadd.s32 %s384, %s385
      %s387 = smul.addr %s386, 8
      %s388 = scalar_lea.vmem %s0, %s387
      %p389 = pneg %p55
      %p390 = pneg %p52
      %s391 = smul.u32 %s25, 4
      %s392 = ssub.s32 %s391, 1
      %p393 = scmp.gt.s32.totalorder %s392, 0
      %s394 = scalar_select %p393, %s392, 0
      %s395 = smul.u32 2, %s394
      %p396 = scmp.lt.s32.totalorder %s24, 1
      %s397 = scalar_select %p396, %s24, 1
      %p398 = scmp.lt.s32.totalorder %s395, 31
      %s399 = scalar_select %p398, %s395, 31
      %s400 = smul.addr %s397, 32
      %s401 = sadd.s32 %s399, %s400
      %s402 = smul.addr %s401, 8
      %s403 = scalar_lea.vmem %s1, %s402
      %p404 = pneg %p91
      %p405 = pneg %p88
      %s406 = sadd.s32 %s25, 1
      %s407 = smul.u32 %s406, 4
      %p408 = scmp.lt.s32.totalorder %s407, 15
      %s409 = scalar_select %p408, %s407, 15
      %s410 = smul.u32 2, %s409
      %p411 = scmp.lt.s32.totalorder %s24, 1
      %s412 = scalar_select %p411, %s24, 1
      %p413 = scmp.lt.s32.totalorder %s410, 31
      %s414 = scalar_select %p413, %s410, 31
      %s415 = smul.addr %s412, 32
      %s416 = sadd.s32 %s414, %s415
      %s417 = smul.addr %s416, 8
      %s418 = scalar_lea.vmem %s2, %s417
      %p419 = pneg %p127
      %p420 = pneg %p124
      %p421 = pneg %p148
      %p422 = pneg %p145
      %p423 = pneg %p169
      %p424 = pneg %p166
      %p425 = pneg %p190
      %p426 = pneg %p187
      %p427 = pneg %p211
      %p428 = pneg %p208
      %p429 = pneg %p232
      %p430 = pneg %p229
      %p431 = pneg %p253
      %p432 = pneg %p250
      %p433 = pneg %p281
      %p434 = pneg %p278
      %s435 = smul.u32 8, %s25
      %p436 = scmp.lt.s32.totalorder %s24, 1
      %s437 = scalar_select %p436, %s24, 1
      %p438 = scmp.lt.s32.totalorder %s435, 31
      %s439 = scalar_select %p438, %s435, 31
      %s440 = smul.addr %s437, 32
      %s441 = sadd.s32 %s439, %s440
      %s442 = smul.addr %s441, 8
      %s443 = scalar_lea.vmem %s9, %s442
      %s444 = smul.u32 8, %s25
      %p445 = scmp.lt.s32.totalorder %s24, 1
      %s446 = scalar_select %p445, %s24, 1
      %p447 = scmp.lt.s32.totalorder %s444, 31
      %s448 = scalar_select %p447, %s444, 31
      %s449 = smul.addr %s446, 32
      %s450 = sadd.s32 %s448, %s449
      %s451 = smul.addr %s450, 8
      %s452 = scalar_lea.vmem %s0, %s451
      %s453 = smul.u32 8, %s25
      %s454 = smul.u32 %s25, 4
      %s455 = ssub.s32 %s454, 1
      %p456 = scmp.gt.s32.totalorder %s455, 0
      %s457 = scalar_select %p456, %s455, 0
      %s458 = smul.u32 2, %s457
      %p459 = scmp.lt.s32.totalorder %s24, 1
      %s460 = scalar_select %p459, %s24, 1
      %p461 = scmp.lt.s32.totalorder %s458, 31
      %s462 = scalar_select %p461, %s458, 31
      %s463 = smul.addr %s460, 32
      %s464 = sadd.s32 %s462, %s463
      %s465 = smul.addr %s464, 8
      %s466 = scalar_lea.vmem %s1, %s465
      %s467 = smul.u32 %s25, 4
      %s468 = ssub.s32 %s467, 1
      %p469 = scmp.gt.s32.totalorder %s468, 0
      %s470 = scalar_select %p469, %s468, 0
      %s471 = smul.u32 2, %s470
      %s472 = sadd.s32 %s25, 1
      %s473 = smul.u32 %s472, 4
      %p474 = scmp.lt.s32.totalorder %s473, 15
      %s475 = scalar_select %p474, %s473, 15
      %s476 = smul.u32 2, %s475
      %p477 = scmp.lt.s32.totalorder %s24, 1
      %s478 = scalar_select %p477, %s24, 1
      %p479 = scmp.lt.s32.totalorder %s476, 31
      %s480 = scalar_select %p479, %s476, 31
      %s481 = smul.addr %s478, 32
      %s482 = sadd.s32 %s480, %s481
      %s483 = smul.addr %s482, 8
      %s484 = scalar_lea.vmem %s2, %s483
      %s485 = sadd.s32 %s25, 1
      %s486 = smul.u32 %s485, 4
      %p487 = scmp.lt.s32.totalorder %s486, 15
      %s488 = scalar_select %p487, %s486, 15
      %s489 = smul.u32 2, %s488
      %s490 = smul.u32 8, %s25
      %p491 = scmp.lt.s32.totalorder %s24, 1
      %s492 = scalar_select %p491, %s24, 1
      %p493 = scmp.lt.s32.totalorder %s490, 31
      %s494 = scalar_select %p493, %s490, 31
      %s495 = smul.addr %s492, 32
      %s496 = sadd.s32 %s494, %s495
      %s497 = smul.addr %s496, 8
      %s498 = scalar_lea.vmem %s9, %s497
      %s499 = smul.u32 8, %s25
      %v500 = vld [vmem:[%s3] sm:$0xff]
      %v501 = vld [vmem:[%s3 + $0x8] sm:$0xff]
      %v502 = vld [vmem:[%s3 + $0x10] sm:$0xff]
      %v503 = vld [vmem:[%s3 + $0x18] sm:$0xff]
      %v504 = vld [vmem:[%s4] sm:$0x1]
      %v505 = vld [vmem:[%s452] sm:$0xff]
      %v506 = vld [vmem:[%s452 + $0x8] sm:$0xff]
      %v507 = vld [vmem:[%s452 + $0x10] sm:$0xff]
      %v508 = vld [vmem:[%s452 + $0x18] sm:$0xff]
      %v509 = vld [vmem:[%s452 + $0x20] sm:$0xff]
      %v510 = vld [vmem:[%s452 + $0x28] sm:$0xff]
      %v511 = vld [vmem:[%s452 + $0x30] sm:$0xff]
      %v512 = vld [vmem:[%s452 + $0x38] sm:$0xff]
      %v514 = vperm.slane %v504, 0
      %vm516 = vcmask 261120
      %v518 = vsel %vm516, %v505, 0
      %v521 = vsel %vm516, %v506, 0
      %v524 = vsel %vm516, %v507, 0
      %v527 = vsel %vm516, %v508, 0
      %v530 = vsel %vm516, %v509, 0
      %v533 = vsel %vm516, %v510, 0
      %v536 = vsel %vm516, %v511, 0
      %v539 = vsel %vm516, %v512, 0
      %541 = vmatpush.msra.mxu0 0.0
      %542 = vmatpush.msra.mxu0 0.0
      %543 = vmatpush.msra.mxu0 0.0
      %544 = vmatpush.msra.mxu0 0.0
      %545 = vmatpush.msra.mxu0 0.0
      %546 = vmatpush.msra.mxu0 0.0
      %547 = vmatpush.msra.mxu0 0.0
      %548 = vmatpush.msra.mxu0 0.0
      %549 = vmatpush.msra.mxu0 0.0
      %550 = vmatpush.msra.mxu0 0.0
      %551 = vmatpush.msra.mxu0 0.0
      %552 = vmatpush.msra.mxu0 0.0
      %553 = vmatpush.msra.mxu0 %v503
      %554 = vmatpush.msra.mxu0 %v502
      %555 = vmatpush.msra.mxu0 %v501
      %556 = vmatpush.msra.mxu0 %v500
      %557 = vmatmul.f32.gmra.mxu0 %v518
      %v558 = vpop.f32.mrf.mxu0
      %v559 = vadd.f32 %v514, %v558
      %560 = vmatmul.f32.gmra.mxu0 %v521
      %v561 = vpop.f32.mrf.mxu0
      %v562 = vadd.f32 %v514, %v561
      %563 = vmatmul.f32.gmra.mxu0 %v524
      %v564 = vpop.f32.mrf.mxu0
      %v565 = vadd.f32 %v514, %v564
      %566 = vmatmul.f32.gmra.mxu0 %v527
      %v567 = vpop.f32.mrf.mxu0
      %v568 = vadd.f32 %v514, %v567
      %569 = vmatmul.f32.gmra.mxu0 %v530
      %v570 = vpop.f32.mrf.mxu0
      %v571 = vadd.f32 %v514, %v570
      %572 = vmatmul.f32.gmra.mxu0 %v533
      %v573 = vpop.f32.mrf.mxu0
      %v574 = vadd.f32 %v514, %v573
      %575 = vmatmul.f32.gmra.mxu0 %v536
      %v576 = vpop.f32.mrf.mxu0
      %v577 = vadd.f32 %v514, %v576
      %578 = vmatmul.f32.gmra.mxu0 %v539
      %v579 = vpop.f32.mrf.mxu0
      %v580 = vadd.f32 %v514, %v579
      %581 = vdwg.mxu0
      %582 = vst [vmem:[#allocation2 + $0x10] sm:$0xff] %v559
      %583 = vst [vmem:[#allocation2 + $0x18] sm:$0xff] %v562
      %584 = vst [vmem:[#allocation2 + $0x20] sm:$0xff] %v565
      %585 = vst [vmem:[#allocation2 + $0x28] sm:$0xff] %v568
      %586 = vst [vmem:[#allocation2 + $0x30] sm:$0xff] %v571
      %587 = vst [vmem:[#allocation2 + $0x38] sm:$0xff] %v574
      %588 = vst [vmem:[#allocation2 + $0x40] sm:$0xff] %v577
      %589 = vst [vmem:[#allocation2 + $0x48] sm:$0xff] %v580
      %v590 = vld [vmem:[%s466] sm:$0xff]
      %v591 = vld [vmem:[%s466 + $0x8] sm:$0xff]
      %v593 = vsel %vm516, %v590, 0
      %v596 = vsel %vm516, %v591, 0
      %598 = vmatpush.msra.mxu0 0.0
      %599 = vmatpush.msra.mxu0 0.0
      %600 = vmatpush.msra.mxu0 0.0
      %601 = vmatpush.msra.mxu0 0.0
      %602 = vmatpush.msra.mxu0 0.0
      %603 = vmatpush.msra.mxu0 0.0
      %604 = vmatpush.msra.mxu0 0.0
      %605 = vmatpush.msra.mxu0 0.0
      %606 = vmatpush.msra.mxu0 0.0
      %607 = vmatpush.msra.mxu0 0.0
      %608 = vmatpush.msra.mxu0 0.0
      %609 = vmatpush.msra.mxu0 0.0
      %610 = vmatpush.msra.mxu0 %v503
      %611 = vmatpush.msra.mxu0 %v502
      %612 = vmatpush.msra.mxu0 %v501
      %613 = vmatpush.msra.mxu0 %v500
      %614 = vmatmul.f32.gmra.mxu0 %v593
      %v615 = vpop.f32.mrf.mxu0
      %v616 = vadd.f32 %v514, %v615
      %617 = vmatmul.f32.gmra.mxu0 %v596
      %v618 = vpop.f32.mrf.mxu0
      %v619 = vadd.f32 %v514, %v618
      %620 = vdwg.mxu0
      %621 = vst [vmem:[#allocation2] sm:$0xff] %v616
      %622 = vst [vmem:[#allocation2 + $0x8] sm:$0xff] %v619
      %v623 = vld [vmem:[%s484] sm:$0xff]
      %v624 = vld [vmem:[%s484 + $0x8] sm:$0xff]
      %v626 = vsel %vm516, %v623, 0
      %v629 = vsel %vm516, %v624, 0
      %631 = vmatpush.msra.mxu0 0.0
      %632 = vmatpush.msra.mxu0 0.0
      %633 = vmatpush.msra.mxu0 0.0
      %634 = vmatpush.msra.mxu0 0.0
      %635 = vmatpush.msra.mxu0 0.0
      %636 = vmatpush.msra.mxu0 0.0
      %637 = vmatpush.msra.mxu0 0.0
      %638 = vmatpush.msra.mxu0 0.0
      %639 = vmatpush.msra.mxu0 0.0
      %640 = vmatpush.msra.mxu0 0.0
      %641 = vmatpush.msra.mxu0 0.0
      %642 = vmatpush.msra.mxu0 0.0
      %643 = vmatpush.msra.mxu0 %v503
      %644 = vmatpush.msra.mxu0 %v502
      %645 = vmatpush.msra.mxu0 %v501
      %646 = vmatpush.msra.mxu0 %v500
      %647 = vmatmul.f32.gmra.mxu0 %v626
      %v648 = vpop.f32.mrf.mxu0
      %v649 = vadd.f32 %v514, %v648
      %650 = vmatmul.f32.gmra.mxu0 %v629
      %v651 = vpop.f32.mrf.mxu0
      %v652 = vadd.f32 %v514, %v651
      %653 = vdwg.mxu0
      %654 = vst [vmem:[#allocation2 + $0x50] sm:$0xff] %v649
      %655 = vst [vmem:[#allocation2 + $0x58] sm:$0xff] %v652
      %p656 = scmp.eq.s32.totalorder %s25, 0
      // Predicated region
      $region57: #{tpu_custom_call.1} parent=55 // pred_check
        %p657 = pneg %p656
      $region58: #{tpu_custom_call.1} parent=55 // pred_check_branch
        %659 = sbr.rel (%p657) target = $region60
      $region59: #{tpu_custom_call.1} parent=55 // pred_region
        %660 = vst [vmem:[#allocation2] sm:$0xff] 0.0
        %661 = vst [vmem:[#allocation2 + $0x8] sm:$0xff] 0.0
      $region60: #{tpu_custom_call.1} parent=55 // pred_fallthru
        _
      %p662 = scmp.eq.s32.totalorder %s25, 3
      // Predicated region
      $region61: #{tpu_custom_call.1} parent=55 // pred_check
        %p663 = pneg %p662
      $region62: #{tpu_custom_call.1} parent=55 // pred_check_branch
        %665 = sbr.rel (%p663) target = $region64
      $region63: #{tpu_custom_call.1} parent=55 // pred_region
        %666 = vst [vmem:[#allocation2 + $0x50] sm:$0xff] 0.0
        %667 = vst [vmem:[#allocation2 + $0x58] sm:$0xff] 0.0
      $region64: #{tpu_custom_call.1} parent=55 // pred_fallthru
        _
      %v668 = vlaneseq
      %v669 = vshrl.u32 %v668, 7
      %v670 = vadd.s32 %v669, 8
      %v671 = vadd.s32 %v669, 16
      %v672 = vadd.s32 %v669, 24
      %v673 = vadd.s32 %v669, 32
      %v674 = vadd.s32 %v669, 40
      %v675 = vadd.s32 %v669, 48
      %v676 = vadd.s32 %v669, 56
      %v677 = vadd.s32 %v669, 64
      %v678 = vadd.s32 %v669, 72
      %v679 = vadd.s32 %v669, 80
      %v680 = vadd.s32 %v669, 88
      %vm681 = vcmp.lt.s32.totalorder %v669, 0
      %v682 = vsub.s32 0, %v669
      %v683 = vsel %vm681, %v682, %v669
      %v684 = vshrl.u32 %v683, 4
      %v685 = vand.u32 %v683, 15
      %v686 = vsub.s32 0, %v685
      %v687 = vsel %vm681, %v686, %v685
      %vm688 = vcmp.lt.s32.totalorder %v670, 0
      %v689 = vsub.s32 0, %v670
      %v690 = vsel %vm688, %v689, %v670
      %v691 = vshrl.u32 %v690, 4
      %v692 = vand.u32 %v690, 15
      %v693 = vsub.s32 0, %v692
      %v694 = vsel %vm688, %v693, %v692
      %vm695 = vcmp.lt.s32.totalorder %v671, 0
      %v696 = vsub.s32 0, %v671
      %v697 = vsel %vm695, %v696, %v671
      %v698 = vshrl.u32 %v697, 4
      %v699 = vand.u32 %v697, 15
      %v700 = vsub.s32 0, %v699
      %v701 = vsel %vm695, %v700, %v699
      %vm702 = vcmp.lt.s32.totalorder %v672, 0
      %v703 = vsub.s32 0, %v672
      %v704 = vsel %vm702, %v703, %v672
      %v705 = vshrl.u32 %v704, 4
      %v706 = vand.u32 %v704, 15
      %v707 = vsub.s32 0, %v706
      %v708 = vsel %vm702, %v707, %v706
      %vm709 = vcmp.lt.s32.totalorder %v673, 0
      %v710 = vsub.s32 0, %v673
      %v711 = vsel %vm709, %v710, %v673
      %v712 = vshrl.u32 %v711, 4
      %v713 = vand.u32 %v711, 15
      %v714 = vsub.s32 0, %v713
      %v715 = vsel %vm709, %v714, %v713
      %vm716 = vcmp.lt.s32.totalorder %v674, 0
      %v717 = vsub.s32 0, %v674
      %v718 = vsel %vm716, %v717, %v674
      %v719 = vshrl.u32 %v718, 4
      %v720 = vand.u32 %v718, 15
      %v721 = vsub.s32 0, %v720
      %v722 = vsel %vm716, %v721, %v720
      %vm723 = vcmp.lt.s32.totalorder %v675, 0
      %v724 = vsub.s32 0, %v675
      %v725 = vsel %vm723, %v724, %v675
      %v726 = vshrl.u32 %v725, 4
      %v727 = vand.u32 %v725, 15
      %v728 = vsub.s32 0, %v727
      %v729 = vsel %vm723, %v728, %v727
      %vm730 = vcmp.lt.s32.totalorder %v676, 0
      %v731 = vsub.s32 0, %v676
      %v732 = vsel %vm730, %v731, %v676
      %v733 = vshrl.u32 %v732, 4
      %v734 = vand.u32 %v732, 15
      %v735 = vsub.s32 0, %v734
      %v736 = vsel %vm730, %v735, %v734
      %vm737 = vcmp.lt.s32.totalorder %v677, 0
      %v738 = vsub.s32 0, %v677
      %v739 = vsel %vm737, %v738, %v677
      %v740 = vshrl.u32 %v739, 4
      %v741 = vand.u32 %v739, 15
      %v742 = vsub.s32 0, %v741
      %v743 = vsel %vm737, %v742, %v741
      %vm744 = vcmp.lt.s32.totalorder %v678, 0
      %v745 = vsub.s32 0, %v678
      %v746 = vsel %vm744, %v745, %v678
      %v747 = vshrl.u32 %v746, 4
      %v748 = vand.u32 %v746, 15
      %v749 = vsub.s32 0, %v748
      %v750 = vsel %vm744, %v749, %v748
      %vm751 = vcmp.lt.s32.totalorder %v679, 0
      %v752 = vsub.s32 0, %v679
      %v753 = vsel %vm751, %v752, %v679
      %v754 = vshrl.u32 %v753, 4
      %v755 = vand.u32 %v753, 15
      %v756 = vsub.s32 0, %v755
      %v757 = vsel %vm751, %v756, %v755
      %vm758 = vcmp.lt.s32.totalorder %v680, 0
      %v759 = vsub.s32 0, %v680
      %v760 = vsel %vm758, %v759, %v680
      %v761 = vshrl.u32 %v760, 4
      %v762 = vand.u32 %v760, 15
      %v763 = vsub.s32 0, %v762
      %v764 = vsel %vm758, %v763, %v762
      %vm765 = vcmp.ne.s32.totalorder %v687, 0
      %vm766 = vcmp.ne.s32.totalorder %v694, 0
      %vm767 = vcmp.ne.s32.totalorder %v701, 0
      %vm768 = vcmp.ne.s32.totalorder %v708, 0
      %vm769 = vcmp.ne.s32.totalorder %v715, 0
      %vm770 = vcmp.ne.s32.totalorder %v722, 0
      %vm771 = vcmp.ne.s32.totalorder %v729, 0
      %vm772 = vcmp.ne.s32.totalorder %v736, 0
      %vm773 = vcmp.ne.s32.totalorder %v743, 0
      %vm774 = vcmp.ne.s32.totalorder %v750, 0
      %vm775 = vcmp.ne.s32.totalorder %v757, 0
      %vm776 = vcmp.ne.s32.totalorder %v764, 0
      %vm777 = vcmp.lt.s32.totalorder %v687, 0
      %vm778 = vcmp.lt.s32.totalorder %v694, 0
      %vm779 = vcmp.lt.s32.totalorder %v701, 0
      %vm780 = vcmp.lt.s32.totalorder %v708, 0
      %vm781 = vcmp.lt.s32.totalorder %v715, 0
      %vm782 = vcmp.lt.s32.totalorder %v722, 0
      %vm783 = vcmp.lt.s32.totalorder %v729, 0
      %vm784 = vcmp.lt.s32.totalorder %v736, 0
      %vm785 = vcmp.lt.s32.totalorder %v743, 0
      %vm786 = vcmp.lt.s32.totalorder %v750, 0
      %vm787 = vcmp.lt.s32.totalorder %v757, 0
      %vm788 = vcmp.lt.s32.totalorder %v764, 0
      %vm789 = vmand %vm777, %vm765
      %vm790 = vmand %vm778, %vm766
      %vm791 = vmand %vm779, %vm767
      %vm792 = vmand %vm780, %vm768
      %vm793 = vmand %vm781, %vm769
      %vm794 = vmand %vm782, %vm770
      %vm795 = vmand %vm783, %vm771
      %vm796 = vmand %vm784, %vm772
      %vm797 = vmand %vm785, %vm773
      %vm798 = vmand %vm786, %vm774
      %vm799 = vmand %vm787, %vm775
      %vm800 = vmand %vm788, %vm776
      %v801 = vadd.s32 %v687, 16
      %v802 = vadd.s32 %v694, 16
      %v803 = vadd.s32 %v701, 16
      %v804 = vadd.s32 %v708, 16
      %v805 = vadd.s32 %v715, 16
      %v806 = vadd.s32 %v722, 16
      %v807 = vadd.s32 %v729, 16
      %v808 = vadd.s32 %v736, 16
      %v809 = vadd.s32 %v743, 16
      %v810 = vadd.s32 %v750, 16
      %v811 = vadd.s32 %v757, 16
      %v812 = vadd.s32 %v764, 16
      %v813 = vsel %vm789, %v801, %v687
      %v814 = vsel %vm790, %v802, %v694
      %v815 = vsel %vm791, %v803, %v701
      %v816 = vsel %vm792, %v804, %v708
      %v817 = vsel %vm793, %v805, %v715
      %v818 = vsel %vm794, %v806, %v722
      %v819 = vsel %vm795, %v807, %v729
      %v820 = vsel %vm796, %v808, %v736
      %v821 = vsel %vm797, %v809, %v743
      %v822 = vsel %vm798, %v810, %v750
      %v823 = vsel %vm799, %v811, %v757
      %v824 = vsel %vm800, %v812, %v764
      %v825 = vrot.slane %v813, 7
      %v826 = vrot.slane %v814, 7
      %v827 = vrot.slane %v815, 7
      %v828 = vrot.slane %v816, 7
      %v829 = vrot.slane %v817, 7
      %v830 = vrot.slane %v818, 7
      %v831 = vrot.slane %v819, 7
      %v832 = vrot.slane %v820, 7
      %v833 = vrot.slane %v821, 7
      %v834 = vrot.slane %v822, 7
      %v835 = vrot.slane %v823, 7
      %v836 = vrot.slane %v824, 7
      %vm837 = vcmp.lt.s32.totalorder %v669, 1
      %v838 = vsel %vm837, %v835, %v836
      %v839 = vsel %vm837, %v834, %v835
      %v840 = vsel %vm837, %v833, %v834
      %v841 = vsel %vm837, %v832, %v833
      %v842 = vsel %vm837, %v831, %v832
      %v843 = vsel %vm837, %v830, %v831
      %v844 = vsel %vm837, %v829, %v830
      %v845 = vsel %vm837, %v828, %v829
      %v846 = vsel %vm837, %v827, %v828
      %v847 = vsel %vm837, %v826, %v827
      %v848 = vsel %vm837, %v825, %v826
      %v849 = vsel %vm837, %v836, %v825
      %v850 = vrot.slane %v813, 1
      %v851 = vrot.slane %v814, 1
      %v852 = vrot.slane %v815, 1
      %v853 = vrot.slane %v816, 1
      %v854 = vrot.slane %v817, 1
      %v855 = vrot.slane %v818, 1
      %v856 = vrot.slane %v819, 1
      %v857 = vrot.slane %v820, 1
      %v858 = vrot.slane %v821, 1
      %v859 = vrot.slane %v822, 1
      %v860 = vrot.slane %v823, 1
      %v861 = vrot.slane %v824, 1
      %vm862 = vcmp.lt.s32.totalorder %v669, 7
      %v863 = vsel %vm862, %v860, %v861
      %v864 = vsel %vm862, %v859, %v860
      %v865 = vsel %vm862, %v858, %v859
      %v866 = vsel %vm862, %v857, %v858
      %v867 = vsel %vm862, %v856, %v857
      %v868 = vsel %vm862, %v855, %v856
      %v869 = vsel %vm862, %v854, %v855
      %v870 = vsel %vm862, %v853, %v854
      %v871 = vsel %vm862, %v852, %v853
      %v872 = vsel %vm862, %v851, %v852
      %v873 = vsel %vm862, %v850, %v851
      %v874 = vsel %vm862, %v861, %v850
      %v875 = vsub.s32 %v813, 1
      %v876 = vsub.s32 %v814, 1
      %v877 = vsub.s32 %v815, 1
      %v878 = vsub.s32 %v816, 1
      %v879 = vsub.s32 %v817, 1
      %v880 = vsub.s32 %v818, 1
      %v881 = vsub.s32 %v819, 1
      %v882 = vsub.s32 %v820, 1
      %v883 = vsub.s32 %v821, 1
      %v884 = vsub.s32 %v822, 1
      %v885 = vsub.s32 %v823, 1
      %v886 = vsub.s32 %v824, 1
      %vm887 = vcmp.eq.s32.totalorder %v849, %v875
      %vm888 = vcmp.eq.s32.totalorder %v848, %v876
      %vm889 = vcmp.eq.s32.totalorder %v847, %v877
      %vm890 = vcmp.eq.s32.totalorder %v846, %v878
      %vm891 = vcmp.eq.s32.totalorder %v845, %v879
      %vm892 = vcmp.eq.s32.totalorder %v844, %v880
      %vm893 = vcmp.eq.s32.totalorder %v843, %v881
      %vm894 = vcmp.eq.s32.totalorder %v842, %v882
      %vm895 = vcmp.eq.s32.totalorder %v841, %v883
      %vm896 = vcmp.eq.s32.totalorder %v840, %v884
      %vm897 = vcmp.eq.s32.totalorder %v839, %v885
      %vm898 = vcmp.eq.s32.totalorder %v838, %v886
      %v899 = vsel %vm887, 1, 0
      %v900 = vsel %vm888, 1, 0
      %v901 = vsel %vm889, 1, 0
      %v902 = vsel %vm890, 1, 0
      %v903 = vsel %vm891, 1, 0
      %v904 = vsel %vm892, 1, 0
      %v905 = vsel %vm893, 1, 0
      %v906 = vsel %vm894, 1, 0
      %v907 = vsel %vm895, 1, 0
      %v908 = vsel %vm896, 1, 0
      %v909 = vsel %vm897, 1, 0
      %v910 = vsel %vm898, 1, 0
      %v911 = vcvt.s32.f32 %v899
      %v912 = vcvt.s32.f32 %v900
      %v913 = vcvt.s32.f32 %v901
      %v914 = vcvt.s32.f32 %v902
      %v915 = vcvt.s32.f32 %v903
      %v916 = vcvt.s32.f32 %v904
      %v917 = vcvt.s32.f32 %v905
      %v918 = vcvt.s32.f32 %v906
      %v919 = vcvt.s32.f32 %v907
      %v920 = vcvt.s32.f32 %v908
      %v921 = vcvt.s32.f32 %v909
      %v922 = vcvt.s32.f32 %v910
      %vm923 = vcmp.eq.s32.totalorder %v873, %v875
      %vm924 = vcmp.eq.s32.totalorder %v872, %v876
      %vm925 = vcmp.eq.s32.totalorder %v871, %v877
      %vm926 = vcmp.eq.s32.totalorder %v870, %v878
      %vm927 = vcmp.eq.s32.totalorder %v869, %v879
      %vm928 = vcmp.eq.s32.totalorder %v868, %v880
      %vm929 = vcmp.eq.s32.totalorder %v867, %v881
      %vm930 = vcmp.eq.s32.totalorder %v866, %v882
      %vm931 = vcmp.eq.s32.totalorder %v865, %v883
      %vm932 = vcmp.eq.s32.totalorder %v864, %v884
      %vm933 = vcmp.eq.s32.totalorder %v863, %v885
      %vm934 = vcmp.eq.s32.totalorder %v874, %v886
      %v935 = vsel %vm923, 1, 0
      %v936 = vsel %vm924, 1, 0
      %v937 = vsel %vm925, 1, 0
      %v938 = vsel %vm926, 1, 0
      %v939 = vsel %vm927, 1, 0
      %v940 = vsel %vm928, 1, 0
      %v941 = vsel %vm929, 1, 0
      %v942 = vsel %vm930, 1, 0
      %v943 = vsel %vm931, 1, 0
      %v944 = vsel %vm932, 1, 0
      %v945 = vsel %vm933, 1, 0
      %v946 = vsel %vm934, 1, 0
      %v947 = vcvt.s32.f32 %v935
      %v948 = vcvt.s32.f32 %v936
      %v949 = vcvt.s32.f32 %v937
      %v950 = vcvt.s32.f32 %v938
      %v951 = vcvt.s32.f32 %v939
      %v952 = vcvt.s32.f32 %v940
      %v953 = vcvt.s32.f32 %v941
      %v954 = vcvt.s32.f32 %v942
      %v955 = vcvt.s32.f32 %v943
      %v956 = vcvt.s32.f32 %v944
      %v957 = vcvt.s32.f32 %v945
      %v958 = vcvt.s32.f32 %v946
      %v959 = vadd.s32 %v813, 1
      %v960 = vadd.s32 %v814, 1
      %v961 = vadd.s32 %v815, 1
      %v962 = vadd.s32 %v816, 1
      %v963 = vadd.s32 %v817, 1
      %v964 = vadd.s32 %v818, 1
      %v965 = vadd.s32 %v819, 1
      %v966 = vadd.s32 %v820, 1
      %v967 = vadd.s32 %v821, 1
      %v968 = vadd.s32 %v822, 1
      %v969 = vadd.s32 %v823, 1
      %v970 = vadd.s32 %v824, 1
      %vm971 = vcmp.eq.s32.totalorder %v849, %v959
      %vm972 = vcmp.eq.s32.totalorder %v848, %v960
      %vm973 = vcmp.eq.s32.totalorder %v847, %v961
      %vm974 = vcmp.eq.s32.totalorder %v846, %v962
      %vm975 = vcmp.eq.s32.totalorder %v845, %v963
      %vm976 = vcmp.eq.s32.totalorder %v844, %v964
      %vm977 = vcmp.eq.s32.totalorder %v843, %v965
      %vm978 = vcmp.eq.s32.totalorder %v842, %v966
      %vm979 = vcmp.eq.s32.totalorder %v841, %v967
      %vm980 = vcmp.eq.s32.totalorder %v840, %v968
      %vm981 = vcmp.eq.s32.totalorder %v839, %v969
      %vm982 = vcmp.eq.s32.totalorder %v838, %v970
      %v983 = vsel %vm971, 1, 0
      %v984 = vsel %vm972, 1, 0
      %v985 = vsel %vm973, 1, 0
      %v986 = vsel %vm974, 1, 0
      %v987 = vsel %vm975, 1, 0
      %v988 = vsel %vm976, 1, 0
      %v989 = vsel %vm977, 1, 0
      %v990 = vsel %vm978, 1, 0
      %v991 = vsel %vm979, 1, 0
      %v992 = vsel %vm980, 1, 0
      %v993 = vsel %vm981, 1, 0
      %v994 = vsel %vm982, 1, 0
      %v995 = vcvt.s32.f32 %v983
      %v996 = vcvt.s32.f32 %v984
      %v997 = vcvt.s32.f32 %v985
      %v998 = vcvt.s32.f32 %v986
      %v999 = vcvt.s32.f32 %v987
      %v1000 = vcvt.s32.f32 %v988
      %v1001 = vcvt.s32.f32 %v989
      %v1002 = vcvt.s32.f32 %v990
      %v1003 = vcvt.s32.f32 %v991
      %v1004 = vcvt.s32.f32 %v992
      %v1005 = vcvt.s32.f32 %v993
      %v1006 = vcvt.s32.f32 %v994
      %vm1007 = vcmp.eq.s32.totalorder %v873, %v959
      %vm1008 = vcmp.eq.s32.totalorder %v872, %v960
      %vm1009 = vcmp.eq.s32.totalorder %v871, %v961
      %vm1010 = vcmp.eq.s32.totalorder %v870, %v962
      %vm1011 = vcmp.eq.s32.totalorder %v869, %v963
      %vm1012 = vcmp.eq.s32.totalorder %v868, %v964
      %vm1013 = vcmp.eq.s32.totalorder %v867, %v965
      %vm1014 = vcmp.eq.s32.totalorder %v866, %v966
      %vm1015 = vcmp.eq.s32.totalorder %v865, %v967
      %vm1016 = vcmp.eq.s32.totalorder %v864, %v968
      %vm1017 = vcmp.eq.s32.totalorder %v863, %v969
      %vm1018 = vcmp.eq.s32.totalorder %v874, %v970
      %v1019 = vsel %vm1007, 1, 0
      %v1020 = vsel %vm1008, 1, 0
      %v1021 = vsel %vm1009, 1, 0
      %v1022 = vsel %vm1010, 1, 0
      %v1023 = vsel %vm1011, 1, 0
      %v1024 = vsel %vm1012, 1, 0
      %v1025 = vsel %vm1013, 1, 0
      %v1026 = vsel %vm1014, 1, 0
      %v1027 = vsel %vm1015, 1, 0
      %v1028 = vsel %vm1016, 1, 0
      %v1029 = vsel %vm1017, 1, 0
      %v1030 = vsel %vm1018, 1, 0
      %v1031 = vcvt.s32.f32 %v1019
      %v1032 = vcvt.s32.f32 %v1020
      %v1033 = vcvt.s32.f32 %v1021
      %v1034 = vcvt.s32.f32 %v1022
      %v1035 = vcvt.s32.f32 %v1023
      %v1036 = vcvt.s32.f32 %v1024
      %v1037 = vcvt.s32.f32 %v1025
      %v1038 = vcvt.s32.f32 %v1026
      %v1039 = vcvt.s32.f32 %v1027
      %v1040 = vcvt.s32.f32 %v1028
      %v1041 = vcvt.s32.f32 %v1029
      %v1042 = vcvt.s32.f32 %v1030
      %v1043 = vld [vmem:[#allocation2] sm:$0xff]
      %v1044 = vld [vmem:[#allocation2 + $0x8] sm:$0xff]
      %v1045 = vld [vmem:[#allocation2 + $0x10] sm:$0xff]
      %v1046 = vld [vmem:[#allocation2 + $0x18] sm:$0xff]
      %v1047 = vld [vmem:[#allocation2 + $0x20] sm:$0xff]
      %v1048 = vld [vmem:[#allocation2 + $0x28] sm:$0xff]
      %v1049 = vld [vmem:[#allocation2 + $0x30] sm:$0xff]
      %v1050 = vld [vmem:[#allocation2 + $0x38] sm:$0xff]
      %v1051 = vld [vmem:[#allocation2 + $0x40] sm:$0xff]
      %v1052 = vld [vmem:[#allocation2 + $0x48] sm:$0xff]
      %v1053 = vld [vmem:[#allocation2 + $0x50] sm:$0xff]
      %v1054 = vld [vmem:[#allocation2 + $0x58] sm:$0xff]
      %v1055 = vrot.slane %v1043, 7
      %v1056 = vrot.slane %v1044, 7
      %v1057 = vrot.slane %v1045, 7
      %v1058 = vrot.slane %v1046, 7
      %v1059 = vrot.slane %v1047, 7
      %v1060 = vrot.slane %v1048, 7
      %v1061 = vrot.slane %v1049, 7
      %v1062 = vrot.slane %v1050, 7
      %v1063 = vrot.slane %v1051, 7
      %v1064 = vrot.slane %v1052, 7
      %v1065 = vrot.slane %v1053, 7
      %v1066 = vrot.slane %v1054, 7
      %v1067 = vsel %vm837, %v1065, %v1066
      %v1068 = vsel %vm837, %v1064, %v1065
      %v1069 = vsel %vm837, %v1063, %v1064
      %v1070 = vsel %vm837, %v1062, %v1063
      %v1071 = vsel %vm837, %v1061, %v1062
      %v1072 = vsel %vm837, %v1060, %v1061
      %v1073 = vsel %vm837, %v1059, %v1060
      %v1074 = vsel %vm837, %v1058, %v1059
      %v1075 = vsel %vm837, %v1057, %v1058
      %v1076 = vsel %vm837, %v1056, %v1057
      %v1077 = vsel %vm837, %v1055, %v1056
      %v1078 = vsel %vm837, %v1066, %v1055
      %v1079 = vrot.slane %v1043, 1
      %v1080 = vrot.slane %v1044, 1
      %v1081 = vrot.slane %v1045, 1
      %v1082 = vrot.slane %v1046, 1
      %v1083 = vrot.slane %v1047, 1
      %v1084 = vrot.slane %v1048, 1
      %v1085 = vrot.slane %v1049, 1
      %v1086 = vrot.slane %v1050, 1
      %v1087 = vrot.slane %v1051, 1
      %v1088 = vrot.slane %v1052, 1
      %v1089 = vrot.slane %v1053, 1
      %v1090 = vrot.slane %v1054, 1
      %v1091 = vsel %vm862, %v1089, %v1090
      %v1092 = vsel %vm862, %v1088, %v1089
      %v1093 = vsel %vm862, %v1087, %v1088
      %v1094 = vsel %vm862, %v1086, %v1087
      %v1095 = vsel %vm862, %v1085, %v1086
      %v1096 = vsel %vm862, %v1084, %v1085
      %v1097 = vsel %vm862, %v1083, %v1084
      %v1098 = vsel %vm862, %v1082, %v1083
      %v1099 = vsel %vm862, %v1081, %v1082
      %v1100 = vsel %vm862, %v1080, %v1081
      %v1101 = vsel %vm862, %v1079, %v1080
      %v1102 = vsel %vm862, %v1090, %v1079
      %1104 = vset.pattern.permute.xlu0 0
      %1105 = vperm.xlu0 %1104, %v911
      %v1106 = vpop.permute.xlu0 %1105
      %1109 = vset.pattern.permute.xlu0 0
      %1110 = vperm.xlu0 %1109, %v912
      %v1111 = vpop.permute.xlu0 %1110
      %1114 = vset.pattern.permute.xlu0 0
      %1115 = vperm.xlu0 %1114, %v913
      %v1116 = vpop.permute.xlu0 %1115
      %1119 = vset.pattern.permute.xlu0 0
      %1120 = vperm.xlu0 %1119, %v914
      %v1121 = vpop.permute.xlu0 %1120
      %1124 = vset.pattern.permute.xlu0 0
      %1125 = vperm.xlu0 %1124, %v915
      %v1126 = vpop.permute.xlu0 %1125
      %1129 = vset.pattern.permute.xlu0 0
      %1130 = vperm.xlu0 %1129, %v916
      %v1131 = vpop.permute.xlu0 %1130
      %1134 = vset.pattern.permute.xlu0 0
      %1135 = vperm.xlu0 %1134, %v917
      %v1136 = vpop.permute.xlu0 %1135
      %1139 = vset.pattern.permute.xlu0 0
      %1140 = vperm.xlu0 %1139, %v918
      %v1141 = vpop.permute.xlu0 %1140
      %1144 = vset.pattern.permute.xlu0 0
      %1145 = vperm.xlu0 %1144, %v919
      %v1146 = vpop.permute.xlu0 %1145
      %1149 = vset.pattern.permute.xlu0 0
      %1150 = vperm.xlu0 %1149, %v920
      %v1151 = vpop.permute.xlu0 %1150
      %1154 = vset.pattern.permute.xlu0 0
      %1155 = vperm.xlu0 %1154, %v921
      %v1156 = vpop.permute.xlu0 %1155
      %1159 = vset.pattern.permute.xlu0 0
      %1160 = vperm.xlu0 %1159, %v922
      %v1161 = vpop.permute.xlu0 %1160
      %v1163 = vmul.f32 %v1078, %v1106
      %v1164 = vmul.f32 %v1077, %v1111
      %v1165 = vmul.f32 %v1076, %v1116
      %v1166 = vmul.f32 %v1075, %v1121
      %v1167 = vmul.f32 %v1074, %v1126
      %v1168 = vmul.f32 %v1073, %v1131
      %v1169 = vmul.f32 %v1072, %v1136
      %v1170 = vmul.f32 %v1071, %v1141
      %v1171 = vmul.f32 %v1070, %v1146
      %v1172 = vmul.f32 %v1069, %v1151
      %v1173 = vmul.f32 %v1068, %v1156
      %v1174 = vmul.f32 %v1067, %v1161
      %1176 = vset.pattern.permute.xlu0 0
      %1177 = vperm.xlu0 %1176, %v947
      %v1178 = vpop.permute.xlu0 %1177
      %1181 = vset.pattern.permute.xlu0 0
      %1182 = vperm.xlu0 %1181, %v948
      %v1183 = vpop.permute.xlu0 %1182
      %1186 = vset.pattern.permute.xlu0 0
      %1187 = vperm.xlu0 %1186, %v949
      %v1188 = vpop.permute.xlu0 %1187
      %1191 = vset.pattern.permute.xlu0 0
      %1192 = vperm.xlu0 %1191, %v950
      %v1193 = vpop.permute.xlu0 %1192
      %1196 = vset.pattern.permute.xlu0 0
      %1197 = vperm.xlu0 %1196, %v951
      %v1198 = vpop.permute.xlu0 %1197
      %1201 = vset.pattern.permute.xlu0 0
      %1202 = vperm.xlu0 %1201, %v952
      %v1203 = vpop.permute.xlu0 %1202
      %1206 = vset.pattern.permute.xlu0 0
      %1207 = vperm.xlu0 %1206, %v953
      %v1208 = vpop.permute.xlu0 %1207
      %1211 = vset.pattern.permute.xlu0 0
      %1212 = vperm.xlu0 %1211, %v954
      %v1213 = vpop.permute.xlu0 %1212
      %1216 = vset.pattern.permute.xlu0 0
      %1217 = vperm.xlu0 %1216, %v955
      %v1218 = vpop.permute.xlu0 %1217
      %1221 = vset.pattern.permute.xlu0 0
      %1222 = vperm.xlu0 %1221, %v956
      %v1223 = vpop.permute.xlu0 %1222
      %1226 = vset.pattern.permute.xlu0 0
      %1227 = vperm.xlu0 %1226, %v957
      %v1228 = vpop.permute.xlu0 %1227
      %1231 = vset.pattern.permute.xlu0 0
      %1232 = vperm.xlu0 %1231, %v958
      %v1233 = vpop.permute.xlu0 %1232
      %v1235 = vmul.f32 %v1101, %v1178
      %v1236 = vmul.f32 %v1100, %v1183
      %v1237 = vmul.f32 %v1099, %v1188
      %v1238 = vmul.f32 %v1098, %v1193
      %v1239 = vmul.f32 %v1097, %v1198
      %v1240 = vmul.f32 %v1096, %v1203
      %v1241 = vmul.f32 %v1095, %v1208
      %v1242 = vmul.f32 %v1094, %v1213
      %v1243 = vmul.f32 %v1093, %v1218
      %v1244 = vmul.f32 %v1092, %v1223
      %v1245 = vmul.f32 %v1091, %v1228
      %v1246 = vmul.f32 %v1102, %v1233
      %v1247 = vadd.f32 %v1163, %v1235
      %v1248 = vadd.f32 %v1164, %v1236
      %v1249 = vadd.f32 %v1165, %v1237
      %v1250 = vadd.f32 %v1166, %v1238
      %v1251 = vadd.f32 %v1167, %v1239
      %v1252 = vadd.f32 %v1168, %v1240
      %v1253 = vadd.f32 %v1169, %v1241
      %v1254 = vadd.f32 %v1170, %v1242
      %v1255 = vadd.f32 %v1171, %v1243
      %v1256 = vadd.f32 %v1172, %v1244
      %v1257 = vadd.f32 %v1173, %v1245
      %v1258 = vadd.f32 %v1174, %v1246
      %1260 = vset.pattern.permute.xlu0 0
      %1261 = vperm.xlu0 %1260, %v995
      %v1262 = vpop.permute.xlu0 %1261
      %1265 = vset.pattern.permute.xlu0 0
      %1266 = vperm.xlu0 %1265, %v996
      %v1267 = vpop.permute.xlu0 %1266
      %1270 = vset.pattern.permute.xlu0 0
      %1271 = vperm.xlu0 %1270, %v997
      %v1272 = vpop.permute.xlu0 %1271
      %1275 = vset.pattern.permute.xlu0 0
      %1276 = vperm.xlu0 %1275, %v998
      %v1277 = vpop.permute.xlu0 %1276
      %1280 = vset.pattern.permute.xlu0 0
      %1281 = vperm.xlu0 %1280, %v999
      %v1282 = vpop.permute.xlu0 %1281
      %1285 = vset.pattern.permute.xlu0 0
      %1286 = vperm.xlu0 %1285, %v1000
      %v1287 = vpop.permute.xlu0 %1286
      %1290 = vset.pattern.permute.xlu0 0
      %1291 = vperm.xlu0 %1290, %v1001
      %v1292 = vpop.permute.xlu0 %1291
      %1295 = vset.pattern.permute.xlu0 0
      %1296 = vperm.xlu0 %1295, %v1002
      %v1297 = vpop.permute.xlu0 %1296
      %1300 = vset.pattern.permute.xlu0 0
      %1301 = vperm.xlu0 %1300, %v1003
      %v1302 = vpop.permute.xlu0 %1301
      %1305 = vset.pattern.permute.xlu0 0
      %1306 = vperm.xlu0 %1305, %v1004
      %v1307 = vpop.permute.xlu0 %1306
      %1310 = vset.pattern.permute.xlu0 0
      %1311 = vperm.xlu0 %1310, %v1005
      %v1312 = vpop.permute.xlu0 %1311
      %1315 = vset.pattern.permute.xlu0 0
      %1316 = vperm.xlu0 %1315, %v1006
      %v1317 = vpop.permute.xlu0 %1316
      %v1319 = vmul.f32 %v1078, %v1262
      %v1320 = vmul.f32 %v1077, %v1267
      %v1321 = vmul.f32 %v1076, %v1272
      %v1322 = vmul.f32 %v1075, %v1277
      %v1323 = vmul.f32 %v1074, %v1282
      %v1324 = vmul.f32 %v1073, %v1287
      %v1325 = vmul.f32 %v1072, %v1292
      %v1326 = vmul.f32 %v1071, %v1297
      %v1327 = vmul.f32 %v1070, %v1302
      %v1328 = vmul.f32 %v1069, %v1307
      %v1329 = vmul.f32 %v1068, %v1312
      %v1330 = vmul.f32 %v1067, %v1317
      %1332 = vset.pattern.permute.xlu0 0
      %1333 = vperm.xlu0 %1332, %v1031
      %v1334 = vpop.permute.xlu0 %1333
      %1337 = vset.pattern.permute.xlu0 0
      %1338 = vperm.xlu0 %1337, %v1032
      %v1339 = vpop.permute.xlu0 %1338
      %1342 = vset.pattern.permute.xlu0 0
      %1343 = vperm.xlu0 %1342, %v1033
      %v1344 = vpop.permute.xlu0 %1343
      %1347 = vset.pattern.permute.xlu0 0
      %1348 = vperm.xlu0 %1347, %v1034
      %v1349 = vpop.permute.xlu0 %1348
      %1352 = vset.pattern.permute.xlu0 0
      %1353 = vperm.xlu0 %1352, %v1035
      %v1354 = vpop.permute.xlu0 %1353
      %1357 = vset.pattern.permute.xlu0 0
      %1358 = vperm.xlu0 %1357, %v1036
      %v1359 = vpop.permute.xlu0 %1358
      %1362 = vset.pattern.permute.xlu0 0
      %1363 = vperm.xlu0 %1362, %v1037
      %v1364 = vpop.permute.xlu0 %1363
      %1367 = vset.pattern.permute.xlu0 0
      %1368 = vperm.xlu0 %1367, %v1038
      %v1369 = vpop.permute.xlu0 %1368
      %1372 = vset.pattern.permute.xlu0 0
      %1373 = vperm.xlu0 %1372, %v1039
      %v1374 = vpop.permute.xlu0 %1373
      %1377 = vset.pattern.permute.xlu0 0
      %1378 = vperm.xlu0 %1377, %v1040
      %v1379 = vpop.permute.xlu0 %1378
      %1382 = vset.pattern.permute.xlu0 0
      %1383 = vperm.xlu0 %1382, %v1041
      %v1384 = vpop.permute.xlu0 %1383
      %1387 = vset.pattern.permute.xlu0 0
      %1388 = vperm.xlu0 %1387, %v1042
      %v1389 = vpop.permute.xlu0 %1388
      %v1391 = vmul.f32 %v1101, %v1334
      %v1392 = vmul.f32 %v1100, %v1339
      %v1393 = vmul.f32 %v1099, %v1344
      %v1394 = vmul.f32 %v1098, %v1349
      %v1395 = vmul.f32 %v1097, %v1354
      %v1396 = vmul.f32 %v1096, %v1359
      %v1397 = vmul.f32 %v1095, %v1364
      %v1398 = vmul.f32 %v1094, %v1369
      %v1399 = vmul.f32 %v1093, %v1374
      %v1400 = vmul.f32 %v1092, %v1379
      %v1401 = vmul.f32 %v1091, %v1384
      %v1402 = vmul.f32 %v1102, %v1389
      %v1403 = vadd.f32 %v1319, %v1391
      %v1404 = vadd.f32 %v1320, %v1392
      %v1405 = vadd.f32 %v1321, %v1393
      %v1406 = vadd.f32 %v1322, %v1394
      %v1407 = vadd.f32 %v1323, %v1395
      %v1408 = vadd.f32 %v1324, %v1396
      %v1409 = vadd.f32 %v1325, %v1397
      %v1410 = vadd.f32 %v1326, %v1398
      %v1411 = vadd.f32 %v1327, %v1399
      %v1412 = vadd.f32 %v1328, %v1400
      %v1413 = vadd.f32 %v1329, %v1401
      %v1414 = vadd.f32 %v1330, %v1402
      %v1415 = vld [vmem:[%s5] sm:$0xff]
      %v1416 = vld [vmem:[%s5 + $0x8] sm:$0x1]
      %v1417 = vld [vmem:[%s6] sm:$0x1]
      %v1418 = vperm.slane %v1415, 0
      %v1419 = vmul.f32 %v1247, %v1418
      %v1420 = vmul.f32 %v1248, %v1418
      %v1421 = vmul.f32 %v1249, %v1418
      %v1422 = vmul.f32 %v1250, %v1418
      %v1423 = vmul.f32 %v1251, %v1418
      %v1424 = vmul.f32 %v1252, %v1418
      %v1425 = vmul.f32 %v1253, %v1418
      %v1426 = vmul.f32 %v1254, %v1418
      %v1427 = vadd.f32 %v1419, 0.0
      %v1428 = vadd.f32 %v1420, 0.0
      %v1429 = vadd.f32 %v1421, 0.0
      %v1430 = vadd.f32 %v1422, 0.0
      %v1431 = vadd.f32 %v1423, 0.0
      %v1432 = vadd.f32 %v1424, 0.0
      %v1433 = vadd.f32 %v1425, 0.0
      %v1434 = vadd.f32 %v1426, 0.0
      %v1435 = vperm.slane %v1415, 1
      %v1436 = vmul.f32 %v1043, %v1435
      %v1437 = vmul.f32 %v1044, %v1435
      %v1438 = vmul.f32 %v1045, %v1435
      %v1439 = vmul.f32 %v1046, %v1435
      %v1440 = vmul.f32 %v1047, %v1435
      %v1441 = vmul.f32 %v1048, %v1435
      %v1442 = vmul.f32 %v1049, %v1435
      %v1443 = vmul.f32 %v1050, %v1435
      %v1444 = vadd.f32 %v1427, %v1436
      %v1445 = vadd.f32 %v1428, %v1437
      %v1446 = vadd.f32 %v1429, %v1438
      %v1447 = vadd.f32 %v1430, %v1439
      %v1448 = vadd.f32 %v1431, %v1440
      %v1449 = vadd.f32 %v1432, %v1441
      %v1450 = vadd.f32 %v1433, %v1442
      %v1451 = vadd.f32 %v1434, %v1443
      %v1452 = vperm.slane %v1415, 2
      %v1453 = vmul.f32 %v1403, %v1452
      %v1454 = vmul.f32 %v1404, %v1452
      %v1455 = vmul.f32 %v1405, %v1452
      %v1456 = vmul.f32 %v1406, %v1452
      %v1457 = vmul.f32 %v1407, %v1452
      %v1458 = vmul.f32 %v1408, %v1452
      %v1459 = vmul.f32 %v1409, %v1452
      %v1460 = vmul.f32 %v1410, %v1452
      %v1461 = vadd.f32 %v1444, %v1453
      %v1462 = vadd.f32 %v1445, %v1454
      %v1463 = vadd.f32 %v1446, %v1455
      %v1464 = vadd.f32 %v1447, %v1456
      %v1465 = vadd.f32 %v1448, %v1457
      %v1466 = vadd.f32 %v1449, %v1458
      %v1467 = vadd.f32 %v1450, %v1459
      %v1468 = vadd.f32 %v1451, %v1460
      %v1469 = vperm.slane %v1415, 3
      %v1470 = vmul.f32 %v1249, %v1469
      %v1471 = vmul.f32 %v1250, %v1469
      %v1472 = vmul.f32 %v1251, %v1469
      %v1473 = vmul.f32 %v1252, %v1469
      %v1474 = vmul.f32 %v1253, %v1469
      %v1475 = vmul.f32 %v1254, %v1469
      %v1476 = vmul.f32 %v1255, %v1469
      %v1477 = vmul.f32 %v1256, %v1469
      %v1478 = vadd.f32 %v1461, %v1470
      %v1479 = vadd.f32 %v1462, %v1471
      %v1480 = vadd.f32 %v1463, %v1472
      %v1481 = vadd.f32 %v1464, %v1473
      %v1482 = vadd.f32 %v1465, %v1474
      %v1483 = vadd.f32 %v1466, %v1475
      %v1484 = vadd.f32 %v1467, %v1476
      %v1485 = vadd.f32 %v1468, %v1477
      %v1486 = vperm.slane %v1415, 4
      %v1487 = vmul.f32 %v1045, %v1486
      %v1488 = vmul.f32 %v1046, %v1486
      %v1489 = vmul.f32 %v1047, %v1486
      %v1490 = vmul.f32 %v1048, %v1486
      %v1491 = vmul.f32 %v1049, %v1486
      %v1492 = vmul.f32 %v1050, %v1486
      %v1493 = vmul.f32 %v1051, %v1486
      %v1494 = vmul.f32 %v1052, %v1486
      %v1495 = vadd.f32 %v1478, %v1487
      %v1496 = vadd.f32 %v1479, %v1488
      %v1497 = vadd.f32 %v1480, %v1489
      %v1498 = vadd.f32 %v1481, %v1490
      %v1499 = vadd.f32 %v1482, %v1491
      %v1500 = vadd.f32 %v1483, %v1492
      %v1501 = vadd.f32 %v1484, %v1493
      %v1502 = vadd.f32 %v1485, %v1494
      %v1503 = vperm.slane %v1415, 5
      %v1504 = vmul.f32 %v1405, %v1503
      %v1505 = vmul.f32 %v1406, %v1503
      %v1506 = vmul.f32 %v1407, %v1503
      %v1507 = vmul.f32 %v1408, %v1503
      %v1508 = vmul.f32 %v1409, %v1503
      %v1509 = vmul.f32 %v1410, %v1503
      %v1510 = vmul.f32 %v1411, %v1503
      %v1511 = vmul.f32 %v1412, %v1503
      %v1512 = vadd.f32 %v1495, %v1504
      %v1513 = vadd.f32 %v1496, %v1505
      %v1514 = vadd.f32 %v1497, %v1506
      %v1515 = vadd.f32 %v1498, %v1507
      %v1516 = vadd.f32 %v1499, %v1508
      %v1517 = vadd.f32 %v1500, %v1509
      %v1518 = vadd.f32 %v1501, %v1510
      %v1519 = vadd.f32 %v1502, %v1511
      %v1520 = vperm.slane %v1415, 6
      %v1521 = vmul.f32 %v1251, %v1520
      %v1522 = vmul.f32 %v1252, %v1520
      %v1523 = vmul.f32 %v1253, %v1520
      %v1524 = vmul.f32 %v1254, %v1520
      %v1525 = vmul.f32 %v1255, %v1520
      %v1526 = vmul.f32 %v1256, %v1520
      %v1527 = vmul.f32 %v1257, %v1520
      %v1528 = vmul.f32 %v1258, %v1520
      %v1529 = vadd.f32 %v1512, %v1521
      %v1530 = vadd.f32 %v1513, %v1522
      %v1531 = vadd.f32 %v1514, %v1523
      %v1532 = vadd.f32 %v1515, %v1524
      %v1533 = vadd.f32 %v1516, %v1525
      %v1534 = vadd.f32 %v1517, %v1526
      %v1535 = vadd.f32 %v1518, %v1527
      %v1536 = vadd.f32 %v1519, %v1528
      %v1537 = vperm.slane %v1415, 7
      %v1538 = vmul.f32 %v1047, %v1537
      %v1539 = vmul.f32 %v1048, %v1537
      %v1540 = vmul.f32 %v1049, %v1537
      %v1541 = vmul.f32 %v1050, %v1537
      %v1542 = vmul.f32 %v1051, %v1537
      %v1543 = vmul.f32 %v1052, %v1537
      %v1544 = vmul.f32 %v1053, %v1537
      %v1545 = vmul.f32 %v1054, %v1537
      %v1546 = vadd.f32 %v1529, %v1538
      %v1547 = vadd.f32 %v1530, %v1539
      %v1548 = vadd.f32 %v1531, %v1540
      %v1549 = vadd.f32 %v1532, %v1541
      %v1550 = vadd.f32 %v1533, %v1542
      %v1551 = vadd.f32 %v1534, %v1543
      %v1552 = vadd.f32 %v1535, %v1544
      %v1553 = vadd.f32 %v1536, %v1545
      %v1554 = vperm.slane %v1416, 0
      %v1555 = vmul.f32 %v1407, %v1554
      %v1556 = vmul.f32 %v1408, %v1554
      %v1557 = vmul.f32 %v1409, %v1554
      %v1558 = vmul.f32 %v1410, %v1554
      %v1559 = vmul.f32 %v1411, %v1554
      %v1560 = vmul.f32 %v1412, %v1554
      %v1561 = vmul.f32 %v1413, %v1554
      %v1562 = vmul.f32 %v1414, %v1554
      %v1563 = vadd.f32 %v1546, %v1555
      %v1564 = vadd.f32 %v1547, %v1556
      %v1565 = vadd.f32 %v1548, %v1557
      %v1566 = vadd.f32 %v1549, %v1558
      %v1567 = vadd.f32 %v1550, %v1559
      %v1568 = vadd.f32 %v1551, %v1560
      %v1569 = vadd.f32 %v1552, %v1561
      %v1570 = vadd.f32 %v1553, %v1562
      %v1572 = vperm.slane %v1417, 0
      %v1574 = vadd.f32 %v1563, %v1572
      %v1575 = vadd.f32 %v1564, %v1572
      %v1576 = vadd.f32 %v1565, %v1572
      %v1577 = vadd.f32 %v1566, %v1572
      %v1578 = vadd.f32 %v1567, %v1572
      %v1579 = vadd.f32 %v1568, %v1572
      %v1580 = vadd.f32 %v1569, %v1572
      %v1581 = vadd.f32 %v1570, %v1572
      %v1582 = vmul.f32 %v1574, 0.5
      %v1583 = vmul.f32 %v1575, 0.5
      %v1584 = vmul.f32 %v1576, 0.5
      %v1585 = vmul.f32 %v1577, 0.5
      %v1586 = vmul.f32 %v1578, 0.5
      %v1587 = vmul.f32 %v1579, 0.5
      %v1588 = vmul.f32 %v1580, 0.5
      %v1589 = vmul.f32 %v1581, 0.5
      %v1590 = vmul.f32 %v1574, 0.70710677
      %v1591 = vmul.f32 %v1575, 0.70710677
      %v1592 = vmul.f32 %v1576, 0.70710677
      %v1593 = vmul.f32 %v1577, 0.70710677
      %v1594 = vmul.f32 %v1578, 0.70710677
      %v1595 = vmul.f32 %v1579, 0.70710677
      %v1596 = vmul.f32 %v1580, 0.70710677
      %v1597 = vmul.f32 %v1581, 0.70710677
      %v1598 = vmul.f32 %v1590, %v1590
      %v1599 = vmin.f32 16.0, %v1598
      %v1600 = vmul.f32 %v1599, 2.1237322e-06
      %v1601 = vadd.f32 %v1600, 0.00028619796
      %v1602 = vmul.f32 %v1599, %v1601
      %v1603 = vadd.f32 %v1602, 0.0036580483
      %v1604 = vmul.f32 %v1599, %v1603
      %v1605 = vadd.f32 %v1604, 0.05243302
      %v1606 = vmul.f32 %v1599, %v1605
      %v1607 = vadd.f32 %v1606, 0.18741608
      %v1608 = vmul.f32 %v1599, %v1607
      %v1609 = vadd.f32 %v1608, 1.1283791
      %v1610 = vmul.f32 %v1590, %v1609
      %v1611 = vmul.f32 %v1599, 3.8918573e-05
      %v1612 = vadd.f32 %v1611, 0.001143296
      %v1613 = vmul.f32 %v1599, %v1612
      %v1614 = vadd.f32 %v1613, 0.014752088
      %v1615 = vmul.f32 %v1599, %v1614
      %v1616 = vadd.f32 %v1615, 0.112945676
      %v1617 = vmul.f32 %v1599, %v1616
      %v1618 = vadd.f32 %v1617, 0.4994258
      %v1619 = vmul.f32 %v1599, %v1618
      %v1620 = vadd.f32 %v1619, 1.0
      %v1621 = vrcp.pop %v1620
      %v1622 = vmul.f32 %v1620, %v1621
      %v1623 = vsub.f32 1.0, %v1622
      %v1624 = vmul.f32 %v1621, %v1623
      %v1625 = vadd.f32 %v1621, %v1624
      %vm1626 = vweird.f32 %v1620
      %vm1627 = vweird.f32 %v1621
      %vm1628 = vmor %vm1626, %vm1627
      %v1629 = vsel %vm1628, %v1621, %v1625
      %v1630 = vand.u32 2147483647, %v1620
      %vm1631 = vcmp.eq.f32.partialorder %v1630, 8.507059e+37
      %v1632 = vand.u32 %v1620, 2147483648
      %v1633 = vor.u32 1.1754944e-38, %v1632
      %v1634 = vsel %vm1631, %v1633, %v1629
      %v1635 = vmul.f32 %v1610, %v1634
      %v1636 = vmin.f32 %v1635, 1.0
      %v1637 = vmax.f32 %v1636, -1.0
      %v1638 = vmul.f32 %v1591, %v1591
      %v1639 = vmin.f32 16.0, %v1638
      %v1640 = vmul.f32 %v1639, 2.1237322e-06
      %v1641 = vadd.f32 %v1640, 0.00028619796
      %v1642 = vmul.f32 %v1639, %v1641
      %v1643 = vadd.f32 %v1642, 0.0036580483
      %v1644 = vmul.f32 %v1639, %v1643
      %v1645 = vadd.f32 %v1644, 0.05243302
      %v1646 = vmul.f32 %v1639, %v1645
      %v1647 = vadd.f32 %v1646, 0.18741608
      %v1648 = vmul.f32 %v1639, %v1647
      %v1649 = vadd.f32 %v1648, 1.1283791
      %v1650 = vmul.f32 %v1591, %v1649
      %v1651 = vmul.f32 %v1639, 3.8918573e-05
      %v1652 = vadd.f32 %v1651, 0.001143296
      %v1653 = vmul.f32 %v1639, %v1652
      %v1654 = vadd.f32 %v1653, 0.014752088
      %v1655 = vmul.f32 %v1639, %v1654
      %v1656 = vadd.f32 %v1655, 0.112945676
      %v1657 = vmul.f32 %v1639, %v1656
      %v1658 = vadd.f32 %v1657, 0.4994258
      %v1659 = vmul.f32 %v1639, %v1658
      %v1660 = vadd.f32 %v1659, 1.0
      %v1661 = vrcp.pop %v1660
      %v1662 = vmul.f32 %v1660, %v1661
      %v1663 = vsub.f32 1.0, %v1662
      %v1664 = vmul.f32 %v1661, %v1663
      %v1665 = vadd.f32 %v1661, %v1664
      %vm1666 = vweird.f32 %v1660
      %vm1667 = vweird.f32 %v1661
      %vm1668 = vmor %vm1666, %vm1667
      %v1669 = vsel %vm1668, %v1661, %v1665
      %v1670 = vand.u32 2147483647, %v1660
      %vm1671 = vcmp.eq.f32.partialorder %v1670, 8.507059e+37
      %v1672 = vand.u32 %v1660, 2147483648
      %v1673 = vor.u32 1.1754944e-38, %v1672
      %v1674 = vsel %vm1671, %v1673, %v1669
      %v1675 = vmul.f32 %v1650, %v1674
      %v1676 = vmin.f32 %v1675, 1.0
      %v1677 = vmax.f32 %v1676, -1.0
      %v1678 = vmul.f32 %v1592, %v1592
      %v1679 = vmin.f32 16.0, %v1678
      %v1680 = vmul.f32 %v1679, 2.1237322e-06
      %v1681 = vadd.f32 %v1680, 0.00028619796
      %v1682 = vmul.f32 %v1679, %v1681
      %v1683 = vadd.f32 %v1682, 0.0036580483
      %v1684 = vmul.f32 %v1679, %v1683
      %v1685 = vadd.f32 %v1684, 0.05243302
      %v1686 = vmul.f32 %v1679, %v1685
      %v1687 = vadd.f32 %v1686, 0.18741608
      %v1688 = vmul.f32 %v1679, %v1687
      %v1689 = vadd.f32 %v1688, 1.1283791
      %v1690 = vmul.f32 %v1592, %v1689
      %v1691 = vmul.f32 %v1679, 3.8918573e-05
      %v1692 = vadd.f32 %v1691, 0.001143296
      %v1693 = vmul.f32 %v1679, %v1692
      %v1694 = vadd.f32 %v1693, 0.014752088
      %v1695 = vmul.f32 %v1679, %v1694
      %v1696 = vadd.f32 %v1695, 0.112945676
      %v1697 = vmul.f32 %v1679, %v1696
      %v1698 = vadd.f32 %v1697, 0.4994258
      %v1699 = vmul.f32 %v1679, %v1698
      %v1700 = vadd.f32 %v1699, 1.0
      %v1701 = vrcp.pop %v1700
      %v1702 = vmul.f32 %v1700, %v1701
      %v1703 = vsub.f32 1.0, %v1702
      %v1704 = vmul.f32 %v1701, %v1703
      %v1705 = vadd.f32 %v1701, %v1704
      %vm1706 = vweird.f32 %v1700
      %vm1707 = vweird.f32 %v1701
      %vm1708 = vmor %vm1706, %vm1707
      %v1709 = vsel %vm1708, %v1701, %v1705
      %v1710 = vand.u32 2147483647, %v1700
      %vm1711 = vcmp.eq.f32.partialorder %v1710, 8.507059e+37
      %v1712 = vand.u32 %v1700, 2147483648
      %v1713 = vor.u32 1.1754944e-38, %v1712
      %v1714 = vsel %vm1711, %v1713, %v1709
      %v1715 = vmul.f32 %v1690, %v1714
      %v1716 = vmin.f32 %v1715, 1.0
      %v1717 = vmax.f32 %v1716, -1.0
      %v1718 = vmul.f32 %v1593, %v1593
      %v1719 = vmin.f32 16.0, %v1718
      %v1720 = vmul.f32 %v1719, 2.1237322e-06
      %v1721 = vadd.f32 %v1720, 0.00028619796
      %v1722 = vmul.f32 %v1719, %v1721
      %v1723 = vadd.f32 %v1722, 0.0036580483
      %v1724 = vmul.f32 %v1719, %v1723
      %v1725 = vadd.f32 %v1724, 0.05243302
      %v1726 = vmul.f32 %v1719, %v1725
      %v1727 = vadd.f32 %v1726, 0.18741608
      %v1728 = vmul.f32 %v1719, %v1727
      %v1729 = vadd.f32 %v1728, 1.1283791
      %v1730 = vmul.f32 %v1593, %v1729
      %v1731 = vmul.f32 %v1719, 3.8918573e-05
      %v1732 = vadd.f32 %v1731, 0.001143296
      %v1733 = vmul.f32 %v1719, %v1732
      %v1734 = vadd.f32 %v1733, 0.014752088
      %v1735 = vmul.f32 %v1719, %v1734
      %v1736 = vadd.f32 %v1735, 0.112945676
      %v1737 = vmul.f32 %v1719, %v1736
      %v1738 = vadd.f32 %v1737, 0.4994258
      %v1739 = vmul.f32 %v1719, %v1738
      %v1740 = vadd.f32 %v1739, 1.0
      %v1741 = vrcp.pop %v1740
      %v1742 = vmul.f32 %v1740, %v1741
      %v1743 = vsub.f32 1.0, %v1742
      %v1744 = vmul.f32 %v1741, %v1743
      %v1745 = vadd.f32 %v1741, %v1744
      %vm1746 = vweird.f32 %v1740
      %vm1747 = vweird.f32 %v1741
      %vm1748 = vmor %vm1746, %vm1747
      %v1749 = vsel %vm1748, %v1741, %v1745
      %v1750 = vand.u32 2147483647, %v1740
      %vm1751 = vcmp.eq.f32.partialorder %v1750, 8.507059e+37
      %v1752 = vand.u32 %v1740, 2147483648
      %v1753 = vor.u32 1.1754944e-38, %v1752
      %v1754 = vsel %vm1751, %v1753, %v1749
      %v1755 = vmul.f32 %v1730, %v1754
      %v1756 = vmin.f32 %v1755, 1.0
      %v1757 = vmax.f32 %v1756, -1.0
      %v1758 = vmul.f32 %v1594, %v1594
      %v1759 = vmin.f32 16.0, %v1758
      %v1760 = vmul.f32 %v1759, 2.1237322e-06
      %v1761 = vadd.f32 %v1760, 0.00028619796
      %v1762 = vmul.f32 %v1759, %v1761
      %v1763 = vadd.f32 %v1762, 0.0036580483
      %v1764 = vmul.f32 %v1759, %v1763
      %v1765 = vadd.f32 %v1764, 0.05243302
      %v1766 = vmul.f32 %v1759, %v1765
      %v1767 = vadd.f32 %v1766, 0.18741608
      %v1768 = vmul.f32 %v1759, %v1767
      %v1769 = vadd.f32 %v1768, 1.1283791
      %v1770 = vmul.f32 %v1594, %v1769
      %v1771 = vmul.f32 %v1759, 3.8918573e-05
      %v1772 = vadd.f32 %v1771, 0.001143296
      %v1773 = vmul.f32 %v1759, %v1772
      %v1774 = vadd.f32 %v1773, 0.014752088
      %v1775 = vmul.f32 %v1759, %v1774
      %v1776 = vadd.f32 %v1775, 0.112945676
      %v1777 = vmul.f32 %v1759, %v1776
      %v1778 = vadd.f32 %v1777, 0.4994258
      %v1779 = vmul.f32 %v1759, %v1778
      %v1780 = vadd.f32 %v1779, 1.0
      %v1781 = vrcp.pop %v1780
      %v1782 = vmul.f32 %v1780, %v1781
      %v1783 = vsub.f32 1.0, %v1782
      %v1784 = vmul.f32 %v1781, %v1783
      %v1785 = vadd.f32 %v1781, %v1784
      %vm1786 = vweird.f32 %v1780
      %vm1787 = vweird.f32 %v1781
      %vm1788 = vmor %vm1786, %vm1787
      %v1789 = vsel %vm1788, %v1781, %v1785
      %v1790 = vand.u32 2147483647, %v1780
      %vm1791 = vcmp.eq.f32.partialorder %v1790, 8.507059e+37
      %v1792 = vand.u32 %v1780, 2147483648
      %v1793 = vor.u32 1.1754944e-38, %v1792
      %v1794 = vsel %vm1791, %v1793, %v1789
      %v1795 = vmul.f32 %v1770, %v1794
      %v1796 = vmin.f32 %v1795, 1.0
      %v1797 = vmax.f32 %v1796, -1.0
      %v1798 = vmul.f32 %v1595, %v1595
      %v1799 = vmin.f32 16.0, %v1798
      %v1800 = vmul.f32 %v1799, 2.1237322e-06
      %v1801 = vadd.f32 %v1800, 0.00028619796
      %v1802 = vmul.f32 %v1799, %v1801
      %v1803 = vadd.f32 %v1802, 0.0036580483
      %v1804 = vmul.f32 %v1799, %v1803
      %v1805 = vadd.f32 %v1804, 0.05243302
      %v1806 = vmul.f32 %v1799, %v1805
      %v1807 = vadd.f32 %v1806, 0.18741608
      %v1808 = vmul.f32 %v1799, %v1807
      %v1809 = vadd.f32 %v1808, 1.1283791
      %v1810 = vmul.f32 %v1595, %v1809
      %v1811 = vmul.f32 %v1799, 3.8918573e-05
      %v1812 = vadd.f32 %v1811, 0.001143296
      %v1813 = vmul.f32 %v1799, %v1812
      %v1814 = vadd.f32 %v1813, 0.014752088
      %v1815 = vmul.f32 %v1799, %v1814
      %v1816 = vadd.f32 %v1815, 0.112945676
      %v1817 = vmul.f32 %v1799, %v1816
      %v1818 = vadd.f32 %v1817, 0.4994258
      %v1819 = vmul.f32 %v1799, %v1818
      %v1820 = vadd.f32 %v1819, 1.0
      %v1821 = vrcp.pop %v1820
      %v1822 = vmul.f32 %v1820, %v1821
      %v1823 = vsub.f32 1.0, %v1822
      %v1824 = vmul.f32 %v1821, %v1823
      %v1825 = vadd.f32 %v1821, %v1824
      %vm1826 = vweird.f32 %v1820
      %vm1827 = vweird.f32 %v1821
      %vm1828 = vmor %vm1826, %vm1827
      %v1829 = vsel %vm1828, %v1821, %v1825
      %v1830 = vand.u32 2147483647, %v1820
      %vm1831 = vcmp.eq.f32.partialorder %v1830, 8.507059e+37
      %v1832 = vand.u32 %v1820, 2147483648
      %v1833 = vor.u32 1.1754944e-38, %v1832
      %v1834 = vsel %vm1831, %v1833, %v1829
      %v1835 = vmul.f32 %v1810, %v1834
      %v1836 = vmin.f32 %v1835, 1.0
      %v1837 = vmax.f32 %v1836, -1.0
      %v1838 = vmul.f32 %v1596, %v1596
      %v1839 = vmin.f32 16.0, %v1838
      %v1840 = vmul.f32 %v1839, 2.1237322e-06
      %v1841 = vadd.f32 %v1840, 0.00028619796
      %v1842 = vmul.f32 %v1839, %v1841
      %v1843 = vadd.f32 %v1842, 0.0036580483
      %v1844 = vmul.f32 %v1839, %v1843
      %v1845 = vadd.f32 %v1844, 0.05243302
      %v1846 = vmul.f32 %v1839, %v1845
      %v1847 = vadd.f32 %v1846, 0.18741608
      %v1848 = vmul.f32 %v1839, %v1847
      %v1849 = vadd.f32 %v1848, 1.1283791
      %v1850 = vmul.f32 %v1596, %v1849
      %v1851 = vmul.f32 %v1839, 3.8918573e-05
      %v1852 = vadd.f32 %v1851, 0.001143296
      %v1853 = vmul.f32 %v1839, %v1852
      %v1854 = vadd.f32 %v1853, 0.014752088
      %v1855 = vmul.f32 %v1839, %v1854
      %v1856 = vadd.f32 %v1855, 0.112945676
      %v1857 = vmul.f32 %v1839, %v1856
      %v1858 = vadd.f32 %v1857, 0.4994258
      %v1859 = vmul.f32 %v1839, %v1858
      %v1860 = vadd.f32 %v1859, 1.0
      %v1861 = vrcp.pop %v1860
      %v1862 = vmul.f32 %v1860, %v1861
      %v1863 = vsub.f32 1.0, %v1862
      %v1864 = vmul.f32 %v1861, %v1863
      %v1865 = vadd.f32 %v1861, %v1864
      %vm1866 = vweird.f32 %v1860
      %vm1867 = vweird.f32 %v1861
      %vm1868 = vmor %vm1866, %vm1867
      %v1869 = vsel %vm1868, %v1861, %v1865
      %v1870 = vand.u32 2147483647, %v1860
      %vm1871 = vcmp.eq.f32.partialorder %v1870, 8.507059e+37
      %v1872 = vand.u32 %v1860, 2147483648
      %v1873 = vor.u32 1.1754944e-38, %v1872
      %v1874 = vsel %vm1871, %v1873, %v1869
      %v1875 = vmul.f32 %v1850, %v1874
      %v1876 = vmin.f32 %v1875, 1.0
      %v1877 = vmax.f32 %v1876, -1.0
      %v1878 = vmul.f32 %v1597, %v1597
      %v1879 = vmin.f32 16.0, %v1878
      %v1880 = vmul.f32 %v1879, 2.1237322e-06
      %v1881 = vadd.f32 %v1880, 0.00028619796
      %v1882 = vmul.f32 %v1879, %v1881
      %v1883 = vadd.f32 %v1882, 0.0036580483
      %v1884 = vmul.f32 %v1879, %v1883
      %v1885 = vadd.f32 %v1884, 0.05243302
      %v1886 = vmul.f32 %v1879, %v1885
      %v1887 = vadd.f32 %v1886, 0.18741608
      %v1888 = vmul.f32 %v1879, %v1887
      %v1889 = vadd.f32 %v1888, 1.1283791
      %v1890 = vmul.f32 %v1597, %v1889
      %v1891 = vmul.f32 %v1879, 3.8918573e-05
      %v1892 = vadd.f32 %v1891, 0.001143296
      %v1893 = vmul.f32 %v1879, %v1892
      %v1894 = vadd.f32 %v1893, 0.014752088
      %v1895 = vmul.f32 %v1879, %v1894
      %v1896 = vadd.f32 %v1895, 0.112945676
      %v1897 = vmul.f32 %v1879, %v1896
      %v1898 = vadd.f32 %v1897, 0.4994258
      %v1899 = vmul.f32 %v1879, %v1898
      %v1900 = vadd.f32 %v1899, 1.0
      %v1901 = vrcp.pop %v1900
      %v1902 = vmul.f32 %v1900, %v1901
      %v1903 = vsub.f32 1.0, %v1902
      %v1904 = vmul.f32 %v1901, %v1903
      %v1905 = vadd.f32 %v1901, %v1904
      %vm1906 = vweird.f32 %v1900
      %vm1907 = vweird.f32 %v1901
      %vm1908 = vmor %vm1906, %vm1907
      %v1909 = vsel %vm1908, %v1901, %v1905
      %v1910 = vand.u32 2147483647, %v1900
      %vm1911 = vcmp.eq.f32.partialorder %v1910, 8.507059e+37
      %v1912 = vand.u32 %v1900, 2147483648
      %v1913 = vor.u32 1.1754944e-38, %v1912
      %v1914 = vsel %vm1911, %v1913, %v1909
      %v1915 = vmul.f32 %v1890, %v1914
      %v1916 = vmin.f32 %v1915, 1.0
      %v1917 = vmax.f32 %v1916, -1.0
      %v1918 = vadd.f32 %v1637, 1.0
      %v1919 = vadd.f32 %v1677, 1.0
      %v1920 = vadd.f32 %v1717, 1.0
      %v1921 = vadd.f32 %v1757, 1.0
      %v1922 = vadd.f32 %v1797, 1.0
      %v1923 = vadd.f32 %v1837, 1.0
      %v1924 = vadd.f32 %v1877, 1.0
      %v1925 = vadd.f32 %v1917, 1.0
      %v1926 = vmul.f32 %v1582, %v1918
      %v1927 = vmul.f32 %v1583, %v1919
      %v1928 = vmul.f32 %v1584, %v1920
      %v1929 = vmul.f32 %v1585, %v1921
      %v1930 = vmul.f32 %v1586, %v1922
      %v1931 = vmul.f32 %v1587, %v1923
      %v1932 = vmul.f32 %v1588, %v1924
      %v1933 = vmul.f32 %v1589, %v1925
      %v1934 = vld [vmem:[%s7] sm:$0xff]
      %v1935 = vld [vmem:[%s7 + $0x8] sm:$0xff]
      %v1936 = vld [vmem:[%s7 + $0x10] sm:$0xff]
      %v1937 = vld [vmem:[%s7 + $0x18] sm:$0xff]
      %v1938 = vld [vmem:[%s7 + $0x20] sm:$0xff]
      %v1939 = vld [vmem:[%s7 + $0x28] sm:$0xff]
      %v1940 = vld [vmem:[%s7 + $0x30] sm:$0xff]
      %v1941 = vld [vmem:[%s7 + $0x38] sm:$0xff]
      %v1942 = vld [vmem:[%s7 + $0x40] sm:$0xff]
      %v1943 = vld [vmem:[%s7 + $0x48] sm:$0xff]
      %v1944 = vld [vmem:[%s7 + $0x50] sm:$0xff]
      %v1945 = vld [vmem:[%s7 + $0x58] sm:$0xff]
      %v1946 = vld [vmem:[%s7 + $0x60] sm:$0xff]
      %v1947 = vld [vmem:[%s7 + $0x68] sm:$0xff]
      %v1948 = vld [vmem:[%s7 + $0x70] sm:$0xff]
      %v1949 = vld [vmem:[%s7 + $0x78] sm:$0xff]
      %v1950 = vld [vmem:[%s8] sm:$0x1]
      %v1952 = vperm.slane %v1950, 0
      %1954 = vmatpush.msra.mxu0 %v1949
      %1955 = vmatpush.msra.mxu0 %v1948
      %1956 = vmatpush.msra.mxu0 %v1947
      %1957 = vmatpush.msra.mxu0 %v1946
      %1958 = vmatpush.msra.mxu0 %v1945
      %1959 = vmatpush.msra.mxu0 %v1944
      %1960 = vmatpush.msra.mxu0 %v1943
      %1961 = vmatpush.msra.mxu0 %v1942
      %1962 = vmatpush.msra.mxu0 %v1941
      %1963 = vmatpush.msra.mxu0 %v1940
      %1964 = vmatpush.msra.mxu0 %v1939
      %1965 = vmatpush.msra.mxu0 %v1938
      %1966 = vmatpush.msra.mxu0 %v1937
      %1967 = vmatpush.msra.mxu0 %v1936
      %1968 = vmatpush.msra.mxu0 %v1935
      %1969 = vmatpush.msra.mxu0 %v1934
      %1970 = vmatmul.f32.gmra.mxu0 %v1926
      %v1971 = vpop.f32.mrf.mxu0
      %v1972 = vadd.f32 %v1952, %v1971
      %1973 = vmatmul.f32.gmra.mxu0 %v1927
      %v1974 = vpop.f32.mrf.mxu0
      %v1975 = vadd.f32 %v1952, %v1974
      %1976 = vmatmul.f32.gmra.mxu0 %v1928
      %v1977 = vpop.f32.mrf.mxu0
      %v1978 = vadd.f32 %v1952, %v1977
      %1979 = vmatmul.f32.gmra.mxu0 %v1929
      %v1980 = vpop.f32.mrf.mxu0
      %v1981 = vadd.f32 %v1952, %v1980
      %1982 = vmatmul.f32.gmra.mxu0 %v1930
      %v1983 = vpop.f32.mrf.mxu0
      %v1984 = vadd.f32 %v1952, %v1983
      %1985 = vmatmul.f32.gmra.mxu0 %v1931
      %v1986 = vpop.f32.mrf.mxu0
      %v1987 = vadd.f32 %v1952, %v1986
      %1988 = vmatmul.f32.gmra.mxu0 %v1932
      %v1989 = vpop.f32.mrf.mxu0
      %v1990 = vadd.f32 %v1952, %v1989
      %1991 = vmatmul.f32.gmra.mxu0 %v1933
      %v1992 = vpop.f32.mrf.mxu0
      %v1993 = vadd.f32 %v1952, %v1992
      %1994 = vdwg.mxu0
      %1995 = vst.msk [vmem:[%s498] sm:$0xff] %vm516, %v1972
      %1996 = vst.msk [vmem:[%s498 + $0x8] sm:$0xff] %vm516, %v1975
      %1997 = vst.msk [vmem:[%s498 + $0x10] sm:$0xff] %vm516, %v1978
      %1998 = vst.msk [vmem:[%s498 + $0x18] sm:$0xff] %vm516, %v1981
      %1999 = vst.msk [vmem:[%s498 + $0x20] sm:$0xff] %vm516, %v1984
      %2000 = vst.msk [vmem:[%s498 + $0x28] sm:$0xff] %vm516, %v1987
      %2001 = vst.msk [vmem:[%s498 + $0x30] sm:$0xff] %vm516, %v1990
      %2002 = vst.msk [vmem:[%s498 + $0x38] sm:$0xff] %vm516, %v1993
      %s2003 = smul.u32 8, %s25
      %p2004 = scmp.lt.s32.totalorder %s24, 1
      %s2005 = scalar_select %p2004, %s24, 1
      %p2006 = scmp.lt.s32.totalorder %s2003, 31
      %s2007 = scalar_select %p2006, %s2003, 31
      %s2008 = smul.addr %s2005, 32
      %s2009 = sadd.s32 %s2007, %s2008
      %s2010 = smul.addr %s2009, 8
      %s2011 = scalar_lea.vmem %s9, %s2010
      // Predicated region
      $region65: #{tpu_custom_call.1} parent=55 // pred_check
        %p2012 = pneg %p278
      $region66: #{tpu_custom_call.1} parent=55 // pred_check_branch
        %2014 = sbr.rel (%p2012) target = $region68
      $region67: #{tpu_custom_call.1} parent=55 // pred_region
        %s2015 = smul.u32 8, %s25
      $region68: #{tpu_custom_call.1} parent=55 // pred_fallthru
        _
    $region56: #{tpu_custom_call.1} parent=5 // pred_fallthru
      _
    %p2016 = scmp.le.s32.totalorder 2, %s15
    // Predicated region
    $region69: #{tpu_custom_call.1} parent=5 // pred_check
      %p2017 = pneg %p2016
    $region70: #{tpu_custom_call.1} parent=5 // pred_check_branch
      %2019 = sbr.rel (%p2017) target = $region72
    $region71: #{tpu_custom_call.1} parent=5 // pred_region
      %s2020 = ssub.s32 %s15, 2
      // Predicated region
      $region73: #{tpu_custom_call.1} parent=71 // pred_check
        %p2021 = pneg %p284
      $region74: #{tpu_custom_call.1} parent=71 // pred_check_branch
        %2023 = sbr.rel (%p2021) target = $region76
      $region75: #{tpu_custom_call.1} parent=71 // pred_region
        %s2024 = smul.u32 8, %s27
        %p2025 = scmp.lt.s32.totalorder %s26, 1
        %s2026 = scalar_select %p2025, %s26, 1
        %p2027 = scmp.lt.s32.totalorder %s2024, 31
        %s2028 = scalar_select %p2027, %s2024, 31
        %s2029 = smul.addr %s2026, 32
        %s2030 = sadd.s32 %s2028, %s2029
        %s2031 = smul.addr %s2030, 8
        %s2032 = scalar_lea.vmem %s9, %s2031
      $region76: #{tpu_custom_call.1} parent=71 // pred_fallthru
        _
    $region72: #{tpu_custom_call.1} parent=5 // pred_fallthru
      _
  $region6: #{tpu_custom_call.1} parent=0 // loop_footer
    %s19 = sadd.s32 1, %s15
  $region7: #{tpu_custom_call.1} parent=0 // loop_footer_branch
    %14 = sbr.rel target = $region3
  $region8: #{tpu_custom_call.1} parent=0 // loop_exit
    _

</llo_original>
